<compile_context>
chip_gen: v7x
topology: tpu7x:2x2x1
jax: 0.10.0
libtpu: 0.0.40
codegen_flags: <defaults>
</compile_context>

<pallas_src>
from collections import defaultdict
from functools import partial

import numpy as np
import jax
import jax.numpy as jnp
from jax.experimental import pallas as pl
from jax.experimental.pallas import tpu as pltpu


# ----------------------------------------------------------------------------
# KG edge-list construction (init-time glue, identical logic to the reference)
# ----------------------------------------------------------------------------
def _edge_list(kg, n_entity, threshold=0):
    # TODO(synk): original threshold is 1000 (relation frequency filter); relaxed to 0
    # for the tiny synthetic KG used here, logic otherwise identical.
    edge_list = []
    self_loop_id = None
    for entity in range(n_entity):
        if entity not in kg:
            continue
        for tail_and_relation in kg[entity]:
            if entity != tail_and_relation[1]:
                edge_list.append((entity, tail_and_relation[1], tail_and_relation[0]))
                edge_list.append((tail_and_relation[1], entity, tail_and_relation[0]))
            else:
                self_loop_id = tail_and_relation[0]
    assert self_loop_id is not None
    for entity in range(n_entity):
        edge_list.append((entity, entity, self_loop_id))
    relation_cnt = defaultdict(int)
    relation_idx = {}
    for h, t, r in edge_list:
        relation_cnt[r] += 1
    for h, t, r in edge_list:
        if relation_cnt[r] > threshold and r not in relation_idx:
            relation_idx[r] = len(relation_idx)
    return (
        [(h, t, relation_idx[r]) for h, t, r in edge_list if relation_cnt[r] > threshold],
        len(relation_idx),
    )


# ----------------------------------------------------------------------------
# Fused Pallas kernel: RGCN + per-user self-attention + scores + CE loss
# ----------------------------------------------------------------------------
def kbrd_fused_kernel(att_ref, a_ref, basis_ref, invdeg_ref, root_ref, rgcn_bias_ref,
                      sel_ref, pos_ref, wa_ref, wb_ref, out_bias_ref, labels_ref,
                      scores_ref, loss_ref, u_scratch):
    R, N, _ = a_ref.shape            # (R, N, N) bf16 adjacency (0/1 exact)
    NB, _, D = basis_ref.shape       # (NB, N, D) f32 basis
    BS, _ = sel_ref.shape            # (B*S, N) one-hot seed selection
    B, _ = scores_ref.shape
    S = BS // B                      # sublane-aligned seed padding per user

    # ---- RGCN (x=None -> one-hot node features), basis decomposition --------
    # W_r = sum_b att[r,b] * basis_b  : VPU fold on the small (N, D) side (f32)
    # msg = sum_r A_r @ W_r           : MXU matmuls, bf16 operands, f32 accumulation
    msg = jnp.zeros((N, D), jnp.float32)
    for r in range(R):                                   # static unroll, R tiny
        w_r = att_ref[r * NB] * basis_ref[0]
        for b in range(1, NB):                           # static unroll, NB tiny
            w_r = w_r + att_ref[r * NB + b] * basis_ref[b]
        msg = msg + jnp.dot(a_ref[r], w_r.astype(jnp.bfloat16),
                            preferred_element_type=jnp.float32)

    # mean aggregation + root embedding + rgcn bias (f32 VPU epilogue)
    nf = msg * invdeg_ref[...] + root_ref[...] + rgcn_bias_ref[...]          # (N, D)

    # ---- batched seed gather + attention logits ------------------------------
    # one-hot gather keeps the seed gather exact and on the MXU
    sel = sel_ref[...]                                                        # (B*S, N)
    h = jnp.dot(sel, nf, preferred_element_type=jnp.float32) + pos_ref[...]  # (B*S, D)
    t = jnp.tanh(jnp.dot(h, wa_ref[...], preferred_element_type=jnp.float32))
    e = jnp.sum(t * wb_ref[...], axis=-1, keepdims=True)                     # (B*S, 1)
    mask = jnp.sum(sel, axis=-1, keepdims=True)          # 1.0 real seed, 0.0 padding

    # ---- per-user softmax + weighted sum (static aligned slices, B tiny) -----
    for b in range(B):                                    # static unroll
        lo, hi = b * S, (b + 1) * S                       # S is a multiple of 8 -> aligned
        hb = h[lo:hi, :]                                  # (S, D)
        mb = mask[lo:hi, :]                               # (S, 1)
        eb = jnp.where(mb > 0.0, e[lo:hi, :], -1e30)      # (S, 1)
        pb = jnp.exp(eb - jnp.max(eb, axis=0, keepdims=True)) * mb
        denom = jnp.maximum(jnp.sum(pb, axis=0, keepdims=True), 1e-30)
        attn = pb / denom                                 # empty seed set -> all zeros
        u_scratch[pl.ds(b, 1), :] = jnp.sum(attn * hb, axis=0, keepdims=True)

    u = u_scratch[...]                                                        # (B, D)

    # ---- scores + cross-entropy (mean reduction) ------------------------------
    # TODO(synk): for large N emit nf in a transposed (D, N) layout instead of the
    # implicit RHS-dim-1 contraction; at N=128 the relayout is a single free tile.
    scores = jax.lax.dot_general(u, nf, (((1,), (1,)), ((), ())),
                                 preferred_element_type=jnp.float32) + out_bias_ref[...]
    scores_ref[...] = scores
    m = jnp.max(scores, axis=1, keepdims=True)
    lse = jnp.log(jnp.sum(jnp.exp(scores - m), axis=1, keepdims=True)) + m
    ids = jax.lax.broadcasted_iota(jnp.int32, scores.shape, 1)
    onehot = (ids == labels_ref[...]).astype(jnp.float32)                    # labels: (B, 1)
    nll = jnp.sum(onehot * (lse - scores), axis=1, keepdims=True)            # (B, 1)
    loss_ref[...] = jnp.mean(nll, axis=0, keepdims=True)                     # (1, 1)


# ----------------------------------------------------------------------------
# Device-side portion (pos tiling + pallas_call) under one jit; B, S static
# ----------------------------------------------------------------------------
@partial(jax.jit, static_argnames=("B", "S"))
def _kbrd_device(att_flat, A_bf16, basis, inv_deg, root, rgcn_bias, sel, pos_enc,
                 wa, wb, out_bias, labels, *, B, S):
    R, N, _ = A_bf16.shape
    NB, _, D = basis.shape

    # positional encodings, tiled per user (fused under this jit)
    n_pos = pos_enc.shape[0]
    pos_s = pos_enc[:min(S, n_pos)]
    if S > n_pos:
        pos_s = jnp.concatenate([pos_s, jnp.zeros((S - n_pos, D), pos_enc.dtype)], axis=0)
    pos_tiled = jnp.tile(pos_s, (B, 1))                   # (B*S, D)

    def vmem():
        return pl.BlockSpec(memory_space=pltpu.MemorySpace.VMEM)

    def smem():
        return pl.BlockSpec(memory_space=pltpu.MemorySpace.SMEM)

    scores, loss = pl.pallas_call(
        kbrd_fused_kernel,
        out_shape=(jax.ShapeDtypeStruct((B, N), jnp.float32),
                   jax.ShapeDtypeStruct((1, 1), jnp.float32)),
        in_specs=[
            smem(),   # att_flat     (R*NB,) scalar table
            vmem(),   # A            (R, N, N) bf16
            vmem(),   # basis        (NB, N, D) f32
            vmem(),   # inv_deg      (N, 1)
            vmem(),   # root         (N, D)
            vmem(),   # rgcn_bias    (1, D)
            vmem(),   # sel          (B*S, N)
            vmem(),   # pos_tiled    (B*S, D)
            vmem(),   # attn_a       (D, D)
            vmem(),   # attn_b row   (1, D)
            vmem(),   # out_bias     (1, N)
            vmem(),   # labels       (B, 1) int32
        ],
        out_specs=(vmem(), vmem()),
        scratch_shapes=[pltpu.VMEM((B, D), jnp.float32)],
    )(att_flat, A_bf16, basis, inv_deg, root, rgcn_bias,
      sel, pos_tiled, wa, wb, out_bias, labels)

    return dict(scores=scores, base_loss=loss[0, 0], loss=loss[0, 0])


# ----------------------------------------------------------------------------
# Wrapper: host-side ragged packing + jitted device call
# ----------------------------------------------------------------------------
def kbrd_forward(params, A_bf16, inv_deg, seed_sets, labels):
    R, N, _ = A_bf16.shape
    NB, _, D = params["basis"].shape
    B = len(seed_sets)
    max_len = max((len(s) for s in seed_sets), default=0)
    S = max(8, -(-max_len // 8) * 8)      # pad to a sublane multiple -> aligned per-user slices

    # static (host-side) packing of the ragged seed sets into a one-hot selection matrix
    sel_np = np.zeros((B * S, N), np.float32)
    for i, seed_set in enumerate(seed_sets):
        for j, ent in enumerate(seed_set):
            sel_np[i * S + j, ent] = 1.0
    sel = jnp.asarray(sel_np)

    return _kbrd_device(
        params["att"].reshape(-1),
        A_bf16,
        params["basis"],
        inv_deg.reshape(N, 1),
        params["root"],
        params["rgcn_bias"].reshape(1, D),
        sel,
        params["pos_encoder"],
        params["attn_a"],
        params["attn_b"].reshape(1, D),
        params["out_bias"].reshape(1, N),
        labels.reshape(B, 1).astype(jnp.int32),
        B=B, S=S,
    )


# ----------------------------------------------------------------------------
# Main
# ----------------------------------------------------------------------------
if __name__ == "__main__":
    n_entity = 128      # multiple of 128 -> lane-dense scores / node features
    dim = 128           # real KBRD dim; lane-dense D
    num_bases = 2
    batch = 2

    # small synthetic KG: relation 1 = self-loop, relations 2 and 3 = regular edges
    kg = {}
    for e in range(n_entity):
        kg[e] = [(1, e), (2, (e + 1) % n_entity)]
        if e % 2 == 0:
            kg[e].append((3, (e + 7) % n_entity))

    edge_list, n_relation = _edge_list(kg, n_entity, threshold=0)
    edge_list = sorted(set(edge_list))  # dedup (list(set(...)) in reference)

    # dense per-relation adjacency + mean-aggregation normalization
    # TODO(synk): normalization uses 1/(total in-degree over all relations); verify against
    # the exact torch_geometric RGCNConv version used by the reference (host-side setup).
    A_np = np.zeros((n_relation, n_entity, n_entity), np.float32)
    for h, t, r in edge_list:
        A_np[r, t, h] = 1.0
    deg = A_np.sum(axis=(0, 2))                              # total incoming messages
    inv_deg_np = np.where(deg > 0, 1.0 / np.maximum(deg, 1.0), 0.0).astype(np.float32)

    # deterministic parameter init
    key = jax.random.PRNGKey(0)
    ks = jax.random.split(key, 8)
    params = dict(
        basis=0.1 * jax.random.normal(ks[0], (num_bases, n_entity, dim), jnp.float32),
        att=0.1 * jax.random.normal(ks[1], (n_relation, num_bases), jnp.float32),
        root=0.1 * jax.random.normal(ks[2], (n_entity, dim), jnp.float32),
        rgcn_bias=0.1 * jax.random.normal(ks[3], (dim,), jnp.float32),
        pos_encoder=0.1 * jax.random.normal(ks[4], (30, dim), jnp.float32),
        attn_a=0.1 * jax.random.normal(ks[5], (dim, dim), jnp.float32),
        attn_b=0.1 * jax.random.normal(ks[6], (dim, 1), jnp.float32),
        out_bias=0.1 * jax.random.normal(ks[7], (n_entity,), jnp.float32),
    )

    # adjacency entries are 0/1 -> bf16 cast is exact and halves the A DMA bytes
    A = jnp.asarray(A_np).astype(jnp.bfloat16)
    inv_deg = jnp.asarray(inv_deg_np)

    seed_sets = [[3, 10, 27, 5], []]          # second user has an empty seed set
    labels = jnp.array([7, 12], jnp.int32)

    out = kbrd_forward(params, A, inv_deg, seed_sets, labels)
    jax.block_until_ready(out["scores"])
    jax.block_until_ready(out["loss"])

    assert out["scores"].shape == (batch, n_entity)
    assert np.isfinite(np.asarray(out["loss"]))
    print("KERNEL_OK")
</pallas_src>

<mosaic_0001>
module attributes {stable_mosaic.version = 11 : i64} {
  func.func @kbrd_fused_kernel(%arg0: memref<6xf32, #tpu.memory_space<smem>>, %arg1: memref<3x128x128xbf16, #tpu.memory_space<vmem>>, %arg2: memref<2x128x128xf32, #tpu.memory_space<vmem>>, %arg3: memref<128x1xf32, #tpu.memory_space<vmem>>, %arg4: memref<128x128xf32, #tpu.memory_space<vmem>>, %arg5: memref<1x128xf32, #tpu.memory_space<vmem>>, %arg6: memref<16x128xf32, #tpu.memory_space<vmem>>, %arg7: memref<16x128xf32, #tpu.memory_space<vmem>>, %arg8: memref<128x128xf32, #tpu.memory_space<vmem>>, %arg9: memref<1x128xf32, #tpu.memory_space<vmem>>, %arg10: memref<1x128xf32, #tpu.memory_space<vmem>>, %arg11: memref<2x1xi32, #tpu.memory_space<vmem>>, %arg12: memref<2x128xf32, #tpu.memory_space<vmem>>, %arg13: memref<1x1xf32, #tpu.memory_space<vmem>>, %arg14: memref<2x128xf32, #tpu.memory_space<vmem>>) attributes {dimension_semantics = [], scalar_prefetch = 0 : i64, scratch_operands = 1 : i64, tpu.core_type = #tpu.core_type<tc>} {
    %cst = arith.constant 0.000000e+00 : f32
    %0 = vector.broadcast %cst : f32 to vector<128x128xf32>
    %c0 = arith.constant 0 : index
    %1 = memref.load %arg0[%c0] : memref<6xf32, #tpu.memory_space<smem>>
    %c0_0 = arith.constant 0 : index
    %c0_1 = arith.constant 0 : index
    %c0_2 = arith.constant 0 : index
    %2 = vector.load %arg2[%c0_0, %c0_1, %c0_2] : memref<2x128x128xf32, #tpu.memory_space<vmem>>, vector<1x128x128xf32>
    %3 = vector.shape_cast %2 : vector<1x128x128xf32> to vector<128x128xf32>
    %4 = vector.broadcast %1 : f32 to vector<128x128xf32>
    %5 = arith.mulf %4, %3 : vector<128x128xf32>
    %c1 = arith.constant 1 : index
    %6 = memref.load %arg0[%c1] : memref<6xf32, #tpu.memory_space<smem>>
    %c1_3 = arith.constant 1 : index
    %c0_4 = arith.constant 0 : index
    %c0_5 = arith.constant 0 : index
    %7 = vector.load %arg2[%c1_3, %c0_4, %c0_5] : memref<2x128x128xf32, #tpu.memory_space<vmem>>, vector<1x128x128xf32>
    %8 = vector.shape_cast %7 : vector<1x128x128xf32> to vector<128x128xf32>
    %9 = vector.broadcast %6 : f32 to vector<128x128xf32>
    %10 = arith.mulf %9, %8 : vector<128x128xf32>
    %11 = arith.addf %5, %10 : vector<128x128xf32>
    %c0_6 = arith.constant 0 : index
    %c0_7 = arith.constant 0 : index
    %c0_8 = arith.constant 0 : index
    %12 = vector.load %arg1[%c0_6, %c0_7, %c0_8] : memref<3x128x128xbf16, #tpu.memory_space<vmem>>, vector<1x128x128xbf16>
    %13 = vector.shape_cast %12 : vector<1x128x128xbf16> to vector<128x128xbf16>
    %14 = arith.truncf %11 : vector<128x128xf32> to vector<128x128xbf16>
    %cst_9 = arith.constant dense<0.000000e+00> : vector<128x128xf32>
    %15 = tpu.matmul %13, %14, %cst_9 {dimension_numbers = #tpu.dot_dimension_numbers<[1], [0], [0], [1], [0, 0, 1, 1], [], []>} : vector<128x128xbf16>, vector<128x128xbf16>, vector<128x128xf32> -> vector<128x128xf32>
    %16 = arith.addf %0, %15 : vector<128x128xf32>
    %c2 = arith.constant 2 : index
    %17 = memref.load %arg0[%c2] : memref<6xf32, #tpu.memory_space<smem>>
    %c0_10 = arith.constant 0 : index
    %c0_11 = arith.constant 0 : index
    %c0_12 = arith.constant 0 : index
    %18 = vector.load %arg2[%c0_10, %c0_11, %c0_12] : memref<2x128x128xf32, #tpu.memory_space<vmem>>, vector<1x128x128xf32>
    %19 = vector.shape_cast %18 : vector<1x128x128xf32> to vector<128x128xf32>
    %20 = vector.broadcast %17 : f32 to vector<128x128xf32>
    %21 = arith.mulf %20, %19 : vector<128x128xf32>
    %c3 = arith.constant 3 : index
    %22 = memref.load %arg0[%c3] : memref<6xf32, #tpu.memory_space<smem>>
    %c1_13 = arith.constant 1 : index
    %c0_14 = arith.constant 0 : index
    %c0_15 = arith.constant 0 : index
    %23 = vector.load %arg2[%c1_13, %c0_14, %c0_15] : memref<2x128x128xf32, #tpu.memory_space<vmem>>, vector<1x128x128xf32>
    %24 = vector.shape_cast %23 : vector<1x128x128xf32> to vector<128x128xf32>
    %25 = vector.broadcast %22 : f32 to vector<128x128xf32>
    %26 = arith.mulf %25, %24 : vector<128x128xf32>
    %27 = arith.addf %21, %26 : vector<128x128xf32>
    %c1_16 = arith.constant 1 : index
    %c0_17 = arith.constant 0 : index
    %c0_18 = arith.constant 0 : index
    %28 = vector.load %arg1[%c1_16, %c0_17, %c0_18] : memref<3x128x128xbf16, #tpu.memory_space<vmem>>, vector<1x128x128xbf16>
    %29 = vector.shape_cast %28 : vector<1x128x128xbf16> to vector<128x128xbf16>
    %30 = arith.truncf %27 : vector<128x128xf32> to vector<128x128xbf16>
    %cst_19 = arith.constant dense<0.000000e+00> : vector<128x128xf32>
    %31 = tpu.matmul %29, %30, %cst_19 {dimension_numbers = #tpu.dot_dimension_numbers<[1], [0], [0], [1], [0, 0, 1, 1], [], []>} : vector<128x128xbf16>, vector<128x128xbf16>, vector<128x128xf32> -> vector<128x128xf32>
    %32 = arith.addf %16, %31 : vector<128x128xf32>
    %c4 = arith.constant 4 : index
    %33 = memref.load %arg0[%c4] : memref<6xf32, #tpu.memory_space<smem>>
    %c0_20 = arith.constant 0 : index
    %c0_21 = arith.constant 0 : index
    %c0_22 = arith.constant 0 : index
    %34 = vector.load %arg2[%c0_20, %c0_21, %c0_22] : memref<2x128x128xf32, #tpu.memory_space<vmem>>, vector<1x128x128xf32>
    %35 = vector.shape_cast %34 : vector<1x128x128xf32> to vector<128x128xf32>
    %36 = vector.broadcast %33 : f32 to vector<128x128xf32>
    %37 = arith.mulf %36, %35 : vector<128x128xf32>
    %c5 = arith.constant 5 : index
    %38 = memref.load %arg0[%c5] : memref<6xf32, #tpu.memory_space<smem>>
    %c1_23 = arith.constant 1 : index
    %c0_24 = arith.constant 0 : index
    %c0_25 = arith.constant 0 : index
    %39 = vector.load %arg2[%c1_23, %c0_24, %c0_25] : memref<2x128x128xf32, #tpu.memory_space<vmem>>, vector<1x128x128xf32>
    %40 = vector.shape_cast %39 : vector<1x128x128xf32> to vector<128x128xf32>
    %41 = vector.broadcast %38 : f32 to vector<128x128xf32>
    %42 = arith.mulf %41, %40 : vector<128x128xf32>
    %43 = arith.addf %37, %42 : vector<128x128xf32>
    %c2_26 = arith.constant 2 : index
    %c0_27 = arith.constant 0 : index
    %c0_28 = arith.constant 0 : index
    %44 = vector.load %arg1[%c2_26, %c0_27, %c0_28] : memref<3x128x128xbf16, #tpu.memory_space<vmem>>, vector<1x128x128xbf16>
    %45 = vector.shape_cast %44 : vector<1x128x128xbf16> to vector<128x128xbf16>
    %46 = arith.truncf %43 : vector<128x128xf32> to vector<128x128xbf16>
    %cst_29 = arith.constant dense<0.000000e+00> : vector<128x128xf32>
    %47 = tpu.matmul %45, %46, %cst_29 {dimension_numbers = #tpu.dot_dimension_numbers<[1], [0], [0], [1], [0, 0, 1, 1], [], []>} : vector<128x128xbf16>, vector<128x128xbf16>, vector<128x128xf32> -> vector<128x128xf32>
    %48 = arith.addf %32, %47 : vector<128x128xf32>
    %c0_30 = arith.constant 0 : index
    %c0_31 = arith.constant 0 : index
    %49 = vector.load %arg3[%c0_30, %c0_31] : memref<128x1xf32, #tpu.memory_space<vmem>>, vector<128x1xf32>
    %50 = vector.broadcast %49 : vector<128x1xf32> to vector<128x128xf32>
    %51 = arith.mulf %48, %50 : vector<128x128xf32>
    %c0_32 = arith.constant 0 : index
    %c0_33 = arith.constant 0 : index
    %52 = vector.load %arg4[%c0_32, %c0_33] : memref<128x128xf32, #tpu.memory_space<vmem>>, vector<128x128xf32>
    %53 = arith.addf %51, %52 : vector<128x128xf32>
    %c0_34 = arith.constant 0 : index
    %c0_35 = arith.constant 0 : index
    %54 = vector.load %arg5[%c0_34, %c0_35] : memref<1x128xf32, #tpu.memory_space<vmem>>, vector<1x128xf32>
    %55 = vector.broadcast %54 : vector<1x128xf32> to vector<128x128xf32>
    %56 = arith.addf %53, %55 : vector<128x128xf32>
    %c0_36 = arith.constant 0 : index
    %c0_37 = arith.constant 0 : index
    %57 = vector.load %arg6[%c0_36, %c0_37] : memref<16x128xf32, #tpu.memory_space<vmem>>, vector<16x128xf32>
    %cst_38 = arith.constant dense<0.000000e+00> : vector<16x128xf32>
    %58 = tpu.matmul %57, %56, %cst_38 {dimension_numbers = #tpu.dot_dimension_numbers<[1], [0], [0], [1], [0, 0, 1, 1], [], []>} : vector<16x128xf32>, vector<128x128xf32>, vector<16x128xf32> -> vector<16x128xf32>
    %c0_39 = arith.constant 0 : index
    %c0_40 = arith.constant 0 : index
    %59 = vector.load %arg7[%c0_39, %c0_40] : memref<16x128xf32, #tpu.memory_space<vmem>>, vector<16x128xf32>
    %60 = arith.addf %58, %59 : vector<16x128xf32>
    %c0_41 = arith.constant 0 : index
    %c0_42 = arith.constant 0 : index
    %61 = vector.load %arg8[%c0_41, %c0_42] : memref<128x128xf32, #tpu.memory_space<vmem>>, vector<128x128xf32>
    %cst_43 = arith.constant dense<0.000000e+00> : vector<16x128xf32>
    %62 = tpu.matmul %60, %61, %cst_43 {dimension_numbers = #tpu.dot_dimension_numbers<[1], [0], [0], [1], [0, 0, 1, 1], [], []>} : vector<16x128xf32>, vector<128x128xf32>, vector<16x128xf32> -> vector<16x128xf32>
    %63 = math.tanh %62 : vector<16x128xf32>
    %c0_44 = arith.constant 0 : index
    %c0_45 = arith.constant 0 : index
    %64 = vector.load %arg9[%c0_44, %c0_45] : memref<1x128xf32, #tpu.memory_space<vmem>>, vector<1x128xf32>
    %65 = vector.broadcast %64 : vector<1x128xf32> to vector<16x128xf32>
    %66 = arith.mulf %63, %65 : vector<16x128xf32>
    %cst_46 = arith.constant dense<0.000000e+00> : vector<16xf32>
    %67 = vector.multi_reduction <add>, %66, %cst_46 [1] : vector<16x128xf32> to vector<16xf32>
    %68 = vector.shape_cast %67 : vector<16xf32> to vector<16x1xf32>
    %cst_47 = arith.constant dense<0.000000e+00> : vector<16xf32>
    %69 = vector.multi_reduction <add>, %57, %cst_47 [1] : vector<16x128xf32> to vector<16xf32>
    %70 = vector.shape_cast %69 : vector<16xf32> to vector<16x1xf32>
    %71 = vector.extract_strided_slice %60 {offsets = [0, 0], sizes = [8, 128], strides = [1, 1]} : vector<16x128xf32> to vector<8x128xf32>
    %72 = vector.extract_strided_slice %70 {offsets = [0, 0], sizes = [8, 1], strides = [1, 1]} : vector<16x1xf32> to vector<8x1xf32>
    %cst_48 = arith.constant 0.000000e+00 : f32
    %73 = vector.broadcast %cst_48 : f32 to vector<8x1xf32>
    %74 = arith.cmpf ogt, %72, %73 : vector<8x1xf32>
    %75 = vector.extract_strided_slice %68 {offsets = [0, 0], sizes = [8, 1], strides = [1, 1]} : vector<16x1xf32> to vector<8x1xf32>
    %cst_49 = arith.constant -1.000000e+30 : f32
    %76 = vector.broadcast %cst_49 : f32 to vector<8x1xf32>
    %77 = arith.select %74, %75, %76 : vector<8x1xi1>, vector<8x1xf32>
    %cst_50 = arith.constant dense<0xFF800000> : vector<1xf32>
    %78 = vector.multi_reduction <maximumf>, %77, %cst_50 [0] : vector<8x1xf32> to vector<1xf32>
    %79 = vector.shape_cast %78 : vector<1xf32> to vector<1x1xf32>
    %80 = vector.broadcast %79 : vector<1x1xf32> to vector<8x1xf32>
    %81 = arith.subf %77, %80 : vector<8x1xf32>
    %82 = math.exp %81 : vector<8x1xf32>
    %83 = arith.mulf %82, %72 : vector<8x1xf32>
    %cst_51 = arith.constant dense<0.000000e+00> : vector<1xf32>
    %84 = vector.multi_reduction <add>, %83, %cst_51 [0] : vector<8x1xf32> to vector<1xf32>
    %85 = vector.shape_cast %84 : vector<1xf32> to vector<1x1xf32>
    %cst_52 = arith.constant 1.000000e-30 : f32
    %86 = vector.broadcast %cst_52 : f32 to vector<1x1xf32>
    %87 = arith.maximumf %85, %86 : vector<1x1xf32>
    %88 = vector.broadcast %87 : vector<1x1xf32> to vector<8x1xf32>
    %89 = arith.divf %83, %88 : vector<8x1xf32>
    %90 = vector.broadcast %89 : vector<8x1xf32> to vector<8x128xf32>
    %91 = arith.mulf %90, %71 : vector<8x128xf32>
    %cst_53 = arith.constant dense<0.000000e+00> : vector<128xf32>
    %92 = vector.multi_reduction <add>, %91, %cst_53 [0] : vector<8x128xf32> to vector<128xf32>
    %93 = vector.shape_cast %92 : vector<128xf32> to vector<1x128xf32>
    %c0_54 = arith.constant 0 : index
    %c0_55 = arith.constant 0 : index
    %94 = vector.load %arg14[%c0_54, %c0_55] : memref<2x128xf32, #tpu.memory_space<vmem>>, vector<1x128xf32>
    tpu.vector_store %arg14[%c0_54, %c0_55], %93 {strides = array<i32>} : memref<2x128xf32, #tpu.memory_space<vmem>>, vector<1x128xf32>,
    %95 = vector.extract_strided_slice %60 {offsets = [8, 0], sizes = [8, 128], strides = [1, 1]} : vector<16x128xf32> to vector<8x128xf32>
    %96 = vector.extract_strided_slice %70 {offsets = [8, 0], sizes = [8, 1], strides = [1, 1]} : vector<16x1xf32> to vector<8x1xf32>
    %cst_56 = arith.constant 0.000000e+00 : f32
    %97 = vector.broadcast %cst_56 : f32 to vector<8x1xf32>
    %98 = arith.cmpf ogt, %96, %97 : vector<8x1xf32>
    %99 = vector.extract_strided_slice %68 {offsets = [8, 0], sizes = [8, 1], strides = [1, 1]} : vector<16x1xf32> to vector<8x1xf32>
    %cst_57 = arith.constant -1.000000e+30 : f32
    %100 = vector.broadcast %cst_57 : f32 to vector<8x1xf32>
    %101 = arith.select %98, %99, %100 : vector<8x1xi1>, vector<8x1xf32>
    %cst_58 = arith.constant dense<0xFF800000> : vector<1xf32>
    %102 = vector.multi_reduction <maximumf>, %101, %cst_58 [0] : vector<8x1xf32> to vector<1xf32>
    %103 = vector.shape_cast %102 : vector<1xf32> to vector<1x1xf32>
    %104 = vector.broadcast %103 : vector<1x1xf32> to vector<8x1xf32>
    %105 = arith.subf %101, %104 : vector<8x1xf32>
    %106 = math.exp %105 : vector<8x1xf32>
    %107 = arith.mulf %106, %96 : vector<8x1xf32>
    %cst_59 = arith.constant dense<0.000000e+00> : vector<1xf32>
    %108 = vector.multi_reduction <add>, %107, %cst_59 [0] : vector<8x1xf32> to vector<1xf32>
    %109 = vector.shape_cast %108 : vector<1xf32> to vector<1x1xf32>
    %cst_60 = arith.constant 1.000000e-30 : f32
    %110 = vector.broadcast %cst_60 : f32 to vector<1x1xf32>
    %111 = arith.maximumf %109, %110 : vector<1x1xf32>
    %112 = vector.broadcast %111 : vector<1x1xf32> to vector<8x1xf32>
    %113 = arith.divf %107, %112 : vector<8x1xf32>
    %114 = vector.broadcast %113 : vector<8x1xf32> to vector<8x128xf32>
    %115 = arith.mulf %114, %95 : vector<8x128xf32>
    %cst_61 = arith.constant dense<0.000000e+00> : vector<128xf32>
    %116 = vector.multi_reduction <add>, %115, %cst_61 [0] : vector<8x128xf32> to vector<128xf32>
    %117 = vector.shape_cast %116 : vector<128xf32> to vector<1x128xf32>
    %c1_62 = arith.constant 1 : index
    %c0_63 = arith.constant 0 : index
    %118 = vector.load %arg14[%c1_62, %c0_63] : memref<2x128xf32, #tpu.memory_space<vmem>>, vector<1x128xf32>
    tpu.vector_store %arg14[%c1_62, %c0_63], %117 {strides = array<i32>} : memref<2x128xf32, #tpu.memory_space<vmem>>, vector<1x128xf32>,
    %c0_64 = arith.constant 0 : index
    %c0_65 = arith.constant 0 : index
    %119 = vector.load %arg14[%c0_64, %c0_65] : memref<2x128xf32, #tpu.memory_space<vmem>>, vector<2x128xf32>
    %cst_66 = arith.constant dense<0.000000e+00> : vector<2x128xf32>
    %120 = tpu.matmul %119, %56, %cst_66 {dimension_numbers = #tpu.dot_dimension_numbers<[1], [1], [0], [0], [0, 0, 1, 0], [], []>} : vector<2x128xf32>, vector<128x128xf32>, vector<2x128xf32> -> vector<2x128xf32>
    %c0_67 = arith.constant 0 : index
    %c0_68 = arith.constant 0 : index
    %121 = vector.load %arg10[%c0_67, %c0_68] : memref<1x128xf32, #tpu.memory_space<vmem>>, vector<1x128xf32>
    %122 = vector.broadcast %121 : vector<1x128xf32> to vector<2x128xf32>
    %123 = arith.addf %120, %122 : vector<2x128xf32>
    %c0_69 = arith.constant 0 : index
    %c0_70 = arith.constant 0 : index
    %124 = vector.load %arg12[%c0_69, %c0_70] : memref<2x128xf32, #tpu.memory_space<vmem>>, vector<2x128xf32>
    tpu.vector_store %arg12[%c0_69, %c0_70], %123 {strides = array<i32>} : memref<2x128xf32, #tpu.memory_space<vmem>>, vector<2x128xf32>,
    %cst_71 = arith.constant dense<0xFF800000> : vector<2xf32>
    %125 = vector.multi_reduction <maximumf>, %123, %cst_71 [1] : vector<2x128xf32> to vector<2xf32>
    %126 = vector.shape_cast %125 : vector<2xf32> to vector<2x1xf32>
    %127 = vector.broadcast %126 : vector<2x1xf32> to vector<2x128xf32>
    %128 = arith.subf %123, %127 : vector<2x128xf32>
    %129 = math.exp %128 : vector<2x128xf32>
    %cst_72 = arith.constant dense<0.000000e+00> : vector<2xf32>
    %130 = vector.multi_reduction <add>, %129, %cst_72 [1] : vector<2x128xf32> to vector<2xf32>
    %131 = vector.shape_cast %130 : vector<2xf32> to vector<2x1xf32>
    %132 = math.log %131 : vector<2x1xf32>
    %133 = arith.addf %132, %126 : vector<2x1xf32>
    %134 = tpu.iota {dimensions = array<i32: 1>} : vector<2x128xi32>
    %c0_73 = arith.constant 0 : index
    %c0_74 = arith.constant 0 : index
    %135 = vector.load %arg11[%c0_73, %c0_74] : memref<2x1xi32, #tpu.memory_space<vmem>>, vector<2x1xi32>
    %136 = vector.broadcast %135 : vector<2x1xi32> to vector<2x128xi32>
    %137 = arith.cmpi eq, %134, %136 : vector<2x128xi32>
    %138 = arith.extui %137 : vector<2x128xi1> to vector<2x128xi32>
    %139 = arith.sitofp %138 : vector<2x128xi32> to vector<2x128xf32>
    %140 = vector.broadcast %133 : vector<2x1xf32> to vector<2x128xf32>
    %141 = arith.subf %140, %123 : vector<2x128xf32>
    %142 = arith.mulf %139, %141 : vector<2x128xf32>
    %cst_75 = arith.constant dense<0.000000e+00> : vector<2xf32>
    %143 = vector.multi_reduction <add>, %142, %cst_75 [1] : vector<2x128xf32> to vector<2xf32>
    %144 = vector.shape_cast %143 : vector<2xf32> to vector<2x1xf32>
    %cst_76 = arith.constant dense<0.000000e+00> : vector<1xf32>
    %145 = vector.multi_reduction <add>, %144, %cst_76 [0] : vector<2x1xf32> to vector<1xf32>
    %146 = vector.shape_cast %145 : vector<1xf32> to vector<1x1xf32>
    %cst_77 = arith.constant 2.000000e+00 : f32
    %147 = vector.broadcast %cst_77 : f32 to vector<1x1xf32>
    %148 = arith.divf %146, %147 : vector<1x1xf32>
    %c0_78 = arith.constant 0 : index
    %c0_79 = arith.constant 0 : index
    %149 = vector.load %arg13[%c0_78, %c0_79] : memref<1x1xf32, #tpu.memory_space<vmem>>, vector<1x1xf32>
    tpu.vector_store %arg13[%c0_78, %c0_79], %148 {strides = array<i32>} : memref<1x1xf32, #tpu.memory_space<vmem>>, vector<1x1xf32>,
    return
  }
}

</mosaic_0001>

<llo_original>
// kernel: _kbrd_device.1
$region0: #{_kbrd_device.1}
  #allocation0 [shape = 'u32[]', space=smem, size = 0x4, offset = 0x4, fixed_abs, tag = 'smem constant byte address 0x4 - core index']
  #allocation1 [shape = 'u32[144,128]{1,0:T(1,128)}', space=vmem, size = 0x12000, scoped, tag = 'internal scratch']
  #allocation2 [shape = 'f32[2,128]{1,0:T(2,128)}', space=vmem, size = 0x400, scoped, tag = 'scratch operand']
  %s0 = inlined_call_operand.vmem [shape: f32[6], index: 0, kind: input, shape index: {}]
  %s1 = inlined_call_operand.hbm [shape: bf16[3,128,128], index: 1, kind: input, shape index: {}]
  %s2 = inlined_call_operand.hbm [shape: f32[2,128,128], index: 2, kind: input, shape index: {}]
  %s3 = inlined_call_operand.vmem [shape: f32[128,1], index: 3, kind: input, shape index: {}]
  %s4 = inlined_call_operand.vmem [shape: f32[128,128], index: 4, kind: input, shape index: {}]
  %s5 = inlined_call_operand.vmem [shape: f32[1,128], index: 5, kind: input, shape index: {}]
  %s6 = inlined_call_operand.vmem [shape: f32[16,128], index: 6, kind: input, shape index: {}]
  %s7 = inlined_call_operand.vmem [shape: f32[16,128], index: 7, kind: input, shape index: {}]
  %s8 = inlined_call_operand.hbm [shape: f32[128,128], index: 8, kind: input, shape index: {}]
  %s9 = inlined_call_operand.vmem [shape: f32[1,128], index: 9, kind: input, shape index: {}]
  %s10 = inlined_call_operand.vmem [shape: f32[1,128], index: 10, kind: input, shape index: {}]
  %s11 = inlined_call_operand.vmem [shape: s32[2,1], index: 11, kind: input, shape index: {}]
  %s12 = inlined_call_operand.hbm [shape: f32[2,128], index: 12, kind: output, shape index: {0}]
  %s13 = inlined_call_operand.hbm [shape: f32[1,1], index: 13, kind: output, shape index: {1}]
  %14 = xla_tuple %s12, %s13
  %s15 = sld [smem:[#allocation0]]
  $region82: #{_kbrd_device.1} parent=0
    _
  %s17 = ssub.s32 1, %s15
  %s18 = scalar_select 0, %s17, %s15
  $region1: #{_kbrd_device.1} parent=0
    #allocation3 [shape = 'u8[512]{0}', space=smem, size = 0x200, scoped, tag = 'input window, operand 0, single buffered']
    #allocation4 [shape = 's32[1]{0}', space=sflag, size = 0x4, scoped, tag = 'scoped memory for _kbrd_device.1']
    #allocation5 [shape = 's32[1]{0}', space=sflag, size = 0x4, scoped, tag = 'scoped memory for _kbrd_device.1']
    #allocation6 [shape = 's32[1]{0}', space=sflag, size = 0x4, scoped, tag = 'scoped memory for _kbrd_device.1']
    #allocation7 [shape = 'u8[98304]{0}', space=vmem, size = 0x18000, scoped, tag = 'input window, operand 1, single buffered']
    #allocation8 [shape = 'u8[131072]{0}', space=vmem, size = 0x20000, scoped, tag = 'input window, operand 2, single buffered']
    #allocation9 [shape = 's32[1]{0}', space=sflag, size = 0x4, scoped, tag = 'scoped memory for _kbrd_device.1']
    #allocation10 [shape = 'u8[65536]{0}', space=vmem, size = 0x10000, scoped, tag = 'input window, operand 8, single buffered']
    #allocation11 [shape = 'u8[1024]{0}', space=vmem, size = 0x400, scoped, tag = 'output window, operand 0, single buffered']
    #allocation12 [shape = 'u8[512]{0}', space=vmem, size = 0x400, scoped, tag = 'output window, operand 1, single buffered']
    #allocation13 [shape = 's32[1]{0}', space=sflag, size = 0x4, scoped, tag = 'scoped memory for _kbrd_device.1']
    %19 = vsyncpa [#allocation6], 0
    %20 = vsyncpa [#allocation4], 0
    %21 = vsyncpa [#allocation9], 0
    %22 = vsyncpa [#allocation5], 0
    %23 = vsyncpa [#allocation13], 0
    // Predicated region
    $region2: #{_kbrd_device.1} parent=1 // pred_check
      _
    $region3: #{_kbrd_device.1} parent=1 // pred_check_branch
      %25 = sbr.rel (0) target = $region5
    $region4: #{_kbrd_device.1} parent=1 // pred_region
      %s27 = ssub.s32 16, 16
      %28 = vsyncadd [#allocation6], %s27
      %s30 = sshll.u32 %s0, 4
      %s31 = int_to_ptr.vmem [resolvable:$true] %s30
      %33 = dma.vmem_to_smem %s31, 16, [#allocation3], [#allocation6]
    $region5: #{_kbrd_device.1} parent=1 // pred_fallthru
      _
    // Predicated region
    $region6: #{_kbrd_device.1} parent=1 // pred_check
      _
    $region7: #{_kbrd_device.1} parent=1 // pred_check_branch
      %35 = sbr.rel (0) target = $region9
    $region8: #{_kbrd_device.1} parent=1 // pred_region
      %s37 = ssub.s32 3072, 3072
      %38 = vsyncadd [#allocation4], %s37
      %s39 = sshll.u32 [#allocation7], 4
      %s40 = int_to_ptr.vmem [resolvable:$true] %s39
      %45 = dma.hbm_to_vmem [thread:$0]  %s1, 3072, %s40, [#allocation4], 64, 64, 4
    $region9: #{_kbrd_device.1} parent=1 // pred_fallthru
      _
    // Predicated region
    $region10: #{_kbrd_device.1} parent=1 // pred_check
      _
    $region11: #{_kbrd_device.1} parent=1 // pred_check_branch
      %47 = sbr.rel (0) target = $region13
    $region12: #{_kbrd_device.1} parent=1 // pred_region
      %s49 = ssub.s32 4096, 4096
      %50 = vsyncadd [#allocation9], %s49
      %s51 = sshll.u32 [#allocation8], 4
      %s52 = int_to_ptr.vmem [resolvable:$true] %s51
      %57 = dma.hbm_to_vmem [thread:$0]  %s2, 4096, %s52, [#allocation9], 128, 128, 8
    $region13: #{_kbrd_device.1} parent=1 // pred_fallthru
      _
    // Predicated region
    $region14: #{_kbrd_device.1} parent=1 // pred_check
      _
    $region15: #{_kbrd_device.1} parent=1 // pred_check_branch
      %59 = sbr.rel (0) target = $region17
    $region16: #{_kbrd_device.1} parent=1 // pred_region
      _
    $region17: #{_kbrd_device.1} parent=1 // pred_fallthru
      _
    // Predicated region
    $region18: #{_kbrd_device.1} parent=1 // pred_check
      _
    $region19: #{_kbrd_device.1} parent=1 // pred_check_branch
      %61 = sbr.rel (0) target = $region21
    $region20: #{_kbrd_device.1} parent=1 // pred_region
      _
    $region21: #{_kbrd_device.1} parent=1 // pred_fallthru
      _
    // Predicated region
    $region22: #{_kbrd_device.1} parent=1 // pred_check
      _
    $region23: #{_kbrd_device.1} parent=1 // pred_check_branch
      %63 = sbr.rel (0) target = $region25
    $region24: #{_kbrd_device.1} parent=1 // pred_region
      _
    $region25: #{_kbrd_device.1} parent=1 // pred_fallthru
      _
    // Predicated region
    $region26: #{_kbrd_device.1} parent=1 // pred_check
      _
    $region27: #{_kbrd_device.1} parent=1 // pred_check_branch
      %65 = sbr.rel (0) target = $region29
    $region28: #{_kbrd_device.1} parent=1 // pred_region
      _
    $region29: #{_kbrd_device.1} parent=1 // pred_fallthru
      _
    // Predicated region
    $region30: #{_kbrd_device.1} parent=1 // pred_check
      _
    $region31: #{_kbrd_device.1} parent=1 // pred_check_branch
      %67 = sbr.rel (0) target = $region33
    $region32: #{_kbrd_device.1} parent=1 // pred_region
      _
    $region33: #{_kbrd_device.1} parent=1 // pred_fallthru
      _
    // Predicated region
    $region34: #{_kbrd_device.1} parent=1 // pred_check
      _
    $region35: #{_kbrd_device.1} parent=1 // pred_check_branch
      %69 = sbr.rel (0) target = $region37
    $region36: #{_kbrd_device.1} parent=1 // pred_region
      %s71 = ssub.s32 2048, 2048
      %72 = vsyncadd [#allocation9], %s71
      %s73 = sshll.u32 [#allocation10], 4
      %s74 = int_to_ptr.vmem [resolvable:$true] %s73
      %79 = dma.hbm_to_vmem [thread:$0]  %s8, 2048, %s74, [#allocation9], 128, 128, 8
    $region37: #{_kbrd_device.1} parent=1 // pred_fallthru
      _
    // Predicated region
    $region38: #{_kbrd_device.1} parent=1 // pred_check
      _
    $region39: #{_kbrd_device.1} parent=1 // pred_check_branch
      %81 = sbr.rel (0) target = $region41
    $region40: #{_kbrd_device.1} parent=1 // pred_region
      _
    $region41: #{_kbrd_device.1} parent=1 // pred_fallthru
      _
    // Predicated region
    $region42: #{_kbrd_device.1} parent=1 // pred_check
      _
    $region43: #{_kbrd_device.1} parent=1 // pred_check_branch
      %83 = sbr.rel (0) target = $region45
    $region44: #{_kbrd_device.1} parent=1 // pred_region
      _
    $region45: #{_kbrd_device.1} parent=1 // pred_fallthru
      _
    // Predicated region
    $region46: #{_kbrd_device.1} parent=1 // pred_check
      _
    $region47: #{_kbrd_device.1} parent=1 // pred_check_branch
      %85 = sbr.rel (0) target = $region49
    $region48: #{_kbrd_device.1} parent=1 // pred_region
      _
    $region49: #{_kbrd_device.1} parent=1 // pred_fallthru
      _
    // Predicated region
    $region50: #{_kbrd_device.1} parent=1 // pred_check
      _
    $region51: #{_kbrd_device.1} parent=1 // pred_check_branch
      %87 = sbr.rel (0) target = $region53
    $region52: #{_kbrd_device.1} parent=1 // pred_region
      %88 = dma.done [#allocation6], 16
    $region53: #{_kbrd_device.1} parent=1 // pred_fallthru
      _
    // Predicated region
    $region54: #{_kbrd_device.1} parent=1 // pred_check
      _
    $region55: #{_kbrd_device.1} parent=1 // pred_check_branch
      %90 = sbr.rel (0) target = $region57
    $region56: #{_kbrd_device.1} parent=1 // pred_region
      %91 = dma.done [#allocation4], 3072
    $region57: #{_kbrd_device.1} parent=1 // pred_fallthru
      _
    // Predicated region
    $region58: #{_kbrd_device.1} parent=1 // pred_check
      _
    $region59: #{_kbrd_device.1} parent=1 // pred_check_branch
      %93 = sbr.rel (0) target = $region61
    $region60: #{_kbrd_device.1} parent=1 // pred_region
      %94 = dma.done [#allocation9], 4096
    $region61: #{_kbrd_device.1} parent=1 // pred_fallthru
      _
    // Predicated region
    $region62: #{_kbrd_device.1} parent=1 // pred_check
      _
    $region63: #{_kbrd_device.1} parent=1 // pred_check_branch
      %96 = sbr.rel (0) target = $region65
    $region64: #{_kbrd_device.1} parent=1 // pred_region
      %97 = dma.done [#allocation9], 2048
    $region65: #{_kbrd_device.1} parent=1 // pred_fallthru
      _
    %98 = sfence
    %s100 = sld [smem:[#allocation3]]
    %v101 = vld [vmem:[#allocation8] sm:$0xff]
    %v102 = vld [vmem:[#allocation8 + $0x8] sm:$0xff]
    %v103 = vld [vmem:[#allocation8 + $0x10] sm:$0xff]
    %v104 = vld [vmem:[#allocation8 + $0x18] sm:$0xff]
    %v105 = vld [vmem:[#allocation8 + $0x20] sm:$0xff]
    %v106 = vld [vmem:[#allocation8 + $0x28] sm:$0xff]
    %v107 = vld [vmem:[#allocation8 + $0x30] sm:$0xff]
    %v108 = vld [vmem:[#allocation8 + $0x38] sm:$0xff]
    %v109 = vld [vmem:[#allocation8 + $0x40] sm:$0xff]
    %v110 = vld [vmem:[#allocation8 + $0x48] sm:$0xff]
    %v111 = vld [vmem:[#allocation8 + $0x50] sm:$0xff]
    %v112 = vld [vmem:[#allocation8 + $0x58] sm:$0xff]
    %v113 = vld [vmem:[#allocation8 + $0x60] sm:$0xff]
    %v114 = vld [vmem:[#allocation8 + $0x68] sm:$0xff]
    %v115 = vld [vmem:[#allocation8 + $0x70] sm:$0xff]
    %v116 = vld [vmem:[#allocation8 + $0x78] sm:$0xff]
    %v117 = vstv %s100
    %v118 = vmul.f32 %v117, %v101
    %v119 = vmul.f32 %v117, %v102
    %v120 = vmul.f32 %v117, %v103
    %v121 = vmul.f32 %v117, %v104
    %v122 = vmul.f32 %v117, %v105
    %v123 = vmul.f32 %v117, %v106
    %v124 = vmul.f32 %v117, %v107
    %v125 = vmul.f32 %v117, %v108
    %v126 = vmul.f32 %v117, %v109
    %v127 = vmul.f32 %v117, %v110
    %v128 = vmul.f32 %v117, %v111
    %v129 = vmul.f32 %v117, %v112
    %v130 = vmul.f32 %v117, %v113
    %v131 = vmul.f32 %v117, %v114
    %v132 = vmul.f32 %v117, %v115
    %v133 = vmul.f32 %v117, %v116
    %s134 = sld [smem:[#allocation3 + $0x1]]
    %s135 = scalar_lea.vmem [#allocation8], 128
    %v136 = vld [vmem:[%s135] sm:$0xff]
    %v137 = vld [vmem:[%s135 + $0x8] sm:$0xff]
    %v138 = vld [vmem:[%s135 + $0x10] sm:$0xff]
    %v139 = vld [vmem:[%s135 + $0x18] sm:$0xff]
    %v140 = vld [vmem:[%s135 + $0x20] sm:$0xff]
    %v141 = vld [vmem:[%s135 + $0x28] sm:$0xff]
    %v142 = vld [vmem:[%s135 + $0x30] sm:$0xff]
    %v143 = vld [vmem:[%s135 + $0x38] sm:$0xff]
    %v144 = vld [vmem:[%s135 + $0x40] sm:$0xff]
    %v145 = vld [vmem:[%s135 + $0x48] sm:$0xff]
    %v146 = vld [vmem:[%s135 + $0x50] sm:$0xff]
    %v147 = vld [vmem:[%s135 + $0x58] sm:$0xff]
    %v148 = vld [vmem:[%s135 + $0x60] sm:$0xff]
    %v149 = vld [vmem:[%s135 + $0x68] sm:$0xff]
    %v150 = vld [vmem:[%s135 + $0x70] sm:$0xff]
    %v151 = vld [vmem:[%s135 + $0x78] sm:$0xff]
    %v152 = vstv %s134
    %v153 = vmul.f32 %v152, %v136
    %v154 = vmul.f32 %v152, %v137
    %v155 = vmul.f32 %v152, %v138
    %v156 = vmul.f32 %v152, %v139
    %v157 = vmul.f32 %v152, %v140
    %v158 = vmul.f32 %v152, %v141
    %v159 = vmul.f32 %v152, %v142
    %v160 = vmul.f32 %v152, %v143
    %v161 = vmul.f32 %v152, %v144
    %v162 = vmul.f32 %v152, %v145
    %v163 = vmul.f32 %v152, %v146
    %v164 = vmul.f32 %v152, %v147
    %v165 = vmul.f32 %v152, %v148
    %v166 = vmul.f32 %v152, %v149
    %v167 = vmul.f32 %v152, %v150
    %v168 = vmul.f32 %v152, %v151
    %v169 = vadd.f32 %v118, %v153
    %v170 = vadd.f32 %v119, %v154
    %v171 = vadd.f32 %v120, %v155
    %v172 = vadd.f32 %v121, %v156
    %v173 = vadd.f32 %v122, %v157
    %v174 = vadd.f32 %v123, %v158
    %v175 = vadd.f32 %v124, %v159
    %v176 = vadd.f32 %v125, %v160
    %v177 = vadd.f32 %v126, %v161
    %v178 = vadd.f32 %v127, %v162
    %v179 = vadd.f32 %v128, %v163
    %v180 = vadd.f32 %v129, %v164
    %v181 = vadd.f32 %v130, %v165
    %v182 = vadd.f32 %v131, %v166
    %v183 = vadd.f32 %v132, %v167
    %v184 = vadd.f32 %v133, %v168
    %v185 = vld [vmem:[#allocation7] sm:$0xf]
    %v186 = vld [vmem:[#allocation7 + $0x4] sm:$0xf]
    %v187 = vld [vmem:[#allocation7 + $0x8] sm:$0xf]
    %v188 = vld [vmem:[#allocation7 + $0xc] sm:$0xf]
    %v189 = vld [vmem:[#allocation7 + $0x10] sm:$0xf]
    %v190 = vld [vmem:[#allocation7 + $0x14] sm:$0xf]
    %v191 = vld [vmem:[#allocation7 + $0x18] sm:$0xf]
    %v192 = vld [vmem:[#allocation7 + $0x1c] sm:$0xf]
    %v193 = vld [vmem:[#allocation7 + $0x20] sm:$0xf]
    %v194 = vld [vmem:[#allocation7 + $0x24] sm:$0xf]
    %v195 = vld [vmem:[#allocation7 + $0x28] sm:$0xf]
    %v196 = vld [vmem:[#allocation7 + $0x2c] sm:$0xf]
    %v197 = vld [vmem:[#allocation7 + $0x30] sm:$0xf]
    %v198 = vld [vmem:[#allocation7 + $0x34] sm:$0xf]
    %v199 = vld [vmem:[#allocation7 + $0x38] sm:$0xf]
    %v200 = vld [vmem:[#allocation7 + $0x3c] sm:$0xf]
    %v201 = vpack.c.bf16 %v170, %v169
    %v202 = vpack.c.bf16 %v172, %v171
    %v203 = vpack.c.bf16 %v174, %v173
    %v204 = vpack.c.bf16 %v176, %v175
    %v205 = vpack.c.bf16 %v178, %v177
    %v206 = vpack.c.bf16 %v180, %v179
    %v207 = vpack.c.bf16 %v182, %v181
    %v208 = vpack.c.bf16 %v184, %v183
    %s209 = sld [smem:[#allocation3 + $0x2]]
    %v210 = vstv %s209
    %v211 = vmul.f32 %v210, %v101
    %v212 = vmul.f32 %v210, %v102
    %v213 = vmul.f32 %v210, %v103
    %v214 = vmul.f32 %v210, %v104
    %v215 = vmul.f32 %v210, %v105
    %v216 = vmul.f32 %v210, %v106
    %v217 = vmul.f32 %v210, %v107
    %v218 = vmul.f32 %v210, %v108
    %v219 = vmul.f32 %v210, %v109
    %v220 = vmul.f32 %v210, %v110
    %v221 = vmul.f32 %v210, %v111
    %v222 = vmul.f32 %v210, %v112
    %v223 = vmul.f32 %v210, %v113
    %v224 = vmul.f32 %v210, %v114
    %v225 = vmul.f32 %v210, %v115
    %v226 = vmul.f32 %v210, %v116
    %s227 = sld [smem:[#allocation3 + $0x3]]
    %v228 = vstv %s227
    %v229 = vmul.f32 %v228, %v136
    %v230 = vmul.f32 %v228, %v137
    %v231 = vmul.f32 %v228, %v138
    %v232 = vmul.f32 %v228, %v139
    %v233 = vmul.f32 %v228, %v140
    %v234 = vmul.f32 %v228, %v141
    %v235 = vmul.f32 %v228, %v142
    %v236 = vmul.f32 %v228, %v143
    %v237 = vmul.f32 %v228, %v144
    %v238 = vmul.f32 %v228, %v145
    %v239 = vmul.f32 %v228, %v146
    %v240 = vmul.f32 %v228, %v147
    %v241 = vmul.f32 %v228, %v148
    %v242 = vmul.f32 %v228, %v149
    %v243 = vmul.f32 %v228, %v150
    %v244 = vmul.f32 %v228, %v151
    %v245 = vadd.f32 %v211, %v229
    %v246 = vadd.f32 %v212, %v230
    %v247 = vadd.f32 %v213, %v231
    %v248 = vadd.f32 %v214, %v232
    %v249 = vadd.f32 %v215, %v233
    %v250 = vadd.f32 %v216, %v234
    %v251 = vadd.f32 %v217, %v235
    %v252 = vadd.f32 %v218, %v236
    %v253 = vadd.f32 %v219, %v237
    %v254 = vadd.f32 %v220, %v238
    %v255 = vadd.f32 %v221, %v239
    %v256 = vadd.f32 %v222, %v240
    %v257 = vadd.f32 %v223, %v241
    %v258 = vadd.f32 %v224, %v242
    %v259 = vadd.f32 %v225, %v243
    %v260 = vadd.f32 %v226, %v244
    %s261 = scalar_lea.vmem [#allocation7], 64
    %v262 = vld [vmem:[%s261] sm:$0xf]
    %v263 = vld [vmem:[%s261 + $0x4] sm:$0xf]
    %v264 = vld [vmem:[%s261 + $0x8] sm:$0xf]
    %v265 = vld [vmem:[%s261 + $0xc] sm:$0xf]
    %v266 = vld [vmem:[%s261 + $0x10] sm:$0xf]
    %v267 = vld [vmem:[%s261 + $0x14] sm:$0xf]
    %v268 = vld [vmem:[%s261 + $0x18] sm:$0xf]
    %v269 = vld [vmem:[%s261 + $0x1c] sm:$0xf]
    %v270 = vld [vmem:[%s261 + $0x20] sm:$0xf]
    %v271 = vld [vmem:[%s261 + $0x24] sm:$0xf]
    %v272 = vld [vmem:[%s261 + $0x28] sm:$0xf]
    %v273 = vld [vmem:[%s261 + $0x2c] sm:$0xf]
    %v274 = vld [vmem:[%s261 + $0x30] sm:$0xf]
    %v275 = vld [vmem:[%s261 + $0x34] sm:$0xf]
    %v276 = vld [vmem:[%s261 + $0x38] sm:$0xf]
    %v277 = vld [vmem:[%s261 + $0x3c] sm:$0xf]
    %v278 = vpack.c.bf16 %v246, %v245
    %v279 = vpack.c.bf16 %v248, %v247
    %v280 = vpack.c.bf16 %v250, %v249
    %v281 = vpack.c.bf16 %v252, %v251
    %v282 = vpack.c.bf16 %v254, %v253
    %v283 = vpack.c.bf16 %v256, %v255
    %v284 = vpack.c.bf16 %v258, %v257
    %v285 = vpack.c.bf16 %v260, %v259
    %v302 = vunpack.c.l.b16 %v262
    %v303 = vunpack.c.l.b16 %v263
    %v304 = vunpack.c.l.b16 %v264
    %v305 = vunpack.c.l.b16 %v265
    %v306 = vunpack.c.l.b16 %v266
    %v307 = vunpack.c.l.b16 %v267
    %v308 = vunpack.c.l.b16 %v268
    %v309 = vunpack.c.l.b16 %v269
    %v310 = vunpack.c.l.b16 %v270
    %v311 = vunpack.c.l.b16 %v271
    %v312 = vunpack.c.l.b16 %v272
    %v313 = vunpack.c.l.b16 %v273
    %v314 = vunpack.c.l.b16 %v274
    %v315 = vunpack.c.l.b16 %v275
    %v316 = vunpack.c.l.b16 %v276
    %v317 = vunpack.c.l.b16 %v277
    %v318 = vpack.c.b16 %v303, %v302
    %v319 = vpack.c.b16 %v305, %v304
    %v320 = vpack.c.b16 %v307, %v306
    %v321 = vpack.c.b16 %v309, %v308
    %v322 = vpack.c.b16 %v311, %v310
    %v323 = vpack.c.b16 %v313, %v312
    %v324 = vpack.c.b16 %v315, %v314
    %v325 = vpack.c.b16 %v317, %v316
    %334 = vmatprep.subr.bf16.mxu0 0
    %335 = vmatpush1.bf16.msra.mxu0 %v278
    %336 = vmatprep.subr.bf16.mxu0 0
    %337 = vmatpush1.bf16.msra.mxu0 %v279
    %338 = vmatprep.subr.bf16.mxu0 0
    %339 = vmatpush1.bf16.msra.mxu0 %v280
    %340 = vmatprep.subr.bf16.mxu0 0
    %341 = vmatpush1.bf16.msra.mxu0 %v281
    %342 = vmatprep.subr.bf16.mxu0 0
    %343 = vmatpush1.bf16.msra.mxu0 %v282
    %344 = vmatprep.subr.bf16.mxu0 0
    %345 = vmatpush1.bf16.msra.mxu0 %v283
    %346 = vmatprep.subr.bf16.mxu0 0
    %347 = vmatpush1.bf16.msra.mxu0 %v284
    %348 = vmatprep.subr.bf16.mxu0 0
    %349 = vmatpush1.bf16.msra.mxu0 %v285
    %350 = vmatprep.subr.bf16.mxu0 0
    %351 = vmatpush1.bf16.msra.mxu0 0
    %352 = vmatprep.subr.bf16.mxu0 0
    %353 = vmatpush1.bf16.msra.mxu0 0
    %354 = vmatprep.subr.bf16.mxu0 0
    %355 = vmatpush1.bf16.msra.mxu0 0
    %356 = vmatprep.subr.bf16.mxu0 0
    %357 = vmatpush1.bf16.msra.mxu0 0
    %358 = vmatprep.subr.bf16.mxu0 0
    %359 = vmatpush1.bf16.msra.mxu0 0
    %360 = vmatprep.subr.bf16.mxu0 0
    %361 = vmatpush1.bf16.msra.mxu0 0
    %362 = vmatprep.subr.bf16.mxu0 0
    %363 = vmatpush1.bf16.msra.mxu0 0
    %364 = vmatprep.subr.bf16.mxu0 0
    %365 = vmatpush1.bf16.msra.mxu0 0
    %366 = vmatprep.mubr.bf16.mxu0 0
    %367 = vmatmul.mubr.bf16.gmra.mrb[0].mxu0 %v318
    %v368 = vpop.f32.mrb[0].mxu0
    %v369 = vadd.f32 0.0, %v368
    %v370 = vpop.f32.mrb[0].mxu0
    %v371 = vpop.f32.mrb[0].mxu0
    %v372 = vadd.f32 0.0, %v371
    %v373 = vpop.f32.mrb[0].mxu0
    %374 = vmatprep.mubr.bf16.mxu0 0
    %375 = vmatmul.mubr.bf16.gmra.mrb[0].mxu0 %v319
    %v376 = vpop.f32.mrb[0].mxu0
    %v377 = vadd.f32 0.0, %v376
    %v378 = vpop.f32.mrb[0].mxu0
    %v379 = vpop.f32.mrb[0].mxu0
    %v380 = vadd.f32 0.0, %v379
    %v381 = vpop.f32.mrb[0].mxu0
    %382 = vmatprep.mubr.bf16.mxu0 0
    %383 = vmatmul.mubr.bf16.gmra.mrb[0].mxu0 %v320
    %v384 = vpop.f32.mrb[0].mxu0
    %v385 = vadd.f32 0.0, %v384
    %v386 = vpop.f32.mrb[0].mxu0
    %v387 = vpop.f32.mrb[0].mxu0
    %v388 = vadd.f32 0.0, %v387
    %v389 = vpop.f32.mrb[0].mxu0
    %390 = vmatprep.mubr.bf16.mxu0 0
    %391 = vmatmul.mubr.bf16.gmra.mrb[0].mxu0 %v321
    %v392 = vpop.f32.mrb[0].mxu0
    %v393 = vadd.f32 0.0, %v392
    %v394 = vpop.f32.mrb[0].mxu0
    %v395 = vpop.f32.mrb[0].mxu0
    %v396 = vadd.f32 0.0, %v395
    %v397 = vpop.f32.mrb[0].mxu0
    %398 = vmatprep.mubr.bf16.mxu0 0
    %399 = vmatmul.mubr.bf16.gmra.mrb[0].mxu0 %v322
    %v400 = vpop.f32.mrb[0].mxu0
    %v401 = vadd.f32 0.0, %v400
    %v402 = vpop.f32.mrb[0].mxu0
    %v403 = vpop.f32.mrb[0].mxu0
    %v404 = vadd.f32 0.0, %v403
    %v405 = vpop.f32.mrb[0].mxu0
    %406 = vmatprep.mubr.bf16.mxu0 0
    %407 = vmatmul.mubr.bf16.gmra.mrb[0].mxu0 %v323
    %v408 = vpop.f32.mrb[0].mxu0
    %v409 = vadd.f32 0.0, %v408
    %v410 = vpop.f32.mrb[0].mxu0
    %v411 = vpop.f32.mrb[0].mxu0
    %v412 = vadd.f32 0.0, %v411
    %v413 = vpop.f32.mrb[0].mxu0
    %414 = vmatprep.mubr.bf16.mxu0 0
    %415 = vmatmul.mubr.bf16.gmra.mrb[0].mxu0 %v324
    %v416 = vpop.f32.mrb[0].mxu0
    %v417 = vadd.f32 0.0, %v416
    %v418 = vpop.f32.mrb[0].mxu0
    %v419 = vpop.f32.mrb[0].mxu0
    %v420 = vadd.f32 0.0, %v419
    %v421 = vpop.f32.mrb[0].mxu0
    %422 = vmatprep.mubr.bf16.mxu0 0
    %423 = vmatmul.mubr.bf16.gmra.mrb[0].mxu0 %v325
    %v424 = vpop.f32.mrb[0].mxu0
    %v425 = vadd.f32 0.0, %v424
    %v426 = vpop.f32.mrb[0].mxu0
    %v427 = vpop.f32.mrb[0].mxu0
    %v428 = vadd.f32 0.0, %v427
    %v429 = vpop.f32.mrb[0].mxu0
    %430 = vdwg.mxu0
    %v447 = vunpack.c.l.b16 %v185
    %v448 = vunpack.c.l.b16 %v186
    %v449 = vunpack.c.l.b16 %v187
    %v450 = vunpack.c.l.b16 %v188
    %v451 = vunpack.c.l.b16 %v189
    %v452 = vunpack.c.l.b16 %v190
    %v453 = vunpack.c.l.b16 %v191
    %v454 = vunpack.c.l.b16 %v192
    %v455 = vunpack.c.l.b16 %v193
    %v456 = vunpack.c.l.b16 %v194
    %v457 = vunpack.c.l.b16 %v195
    %v458 = vunpack.c.l.b16 %v196
    %v459 = vunpack.c.l.b16 %v197
    %v460 = vunpack.c.l.b16 %v198
    %v461 = vunpack.c.l.b16 %v199
    %v462 = vunpack.c.l.b16 %v200
    %v463 = vpack.c.b16 %v448, %v447
    %v464 = vpack.c.b16 %v450, %v449
    %v465 = vpack.c.b16 %v452, %v451
    %v466 = vpack.c.b16 %v454, %v453
    %v467 = vpack.c.b16 %v456, %v455
    %v468 = vpack.c.b16 %v458, %v457
    %v469 = vpack.c.b16 %v460, %v459
    %v470 = vpack.c.b16 %v462, %v461
    %479 = vmatprep.subr.bf16.mxu0 0
    %480 = vmatpush1.bf16.msra.mxu0 %v201
    %481 = vmatprep.subr.bf16.mxu0 0
    %482 = vmatpush1.bf16.msra.mxu0 %v202
    %483 = vmatprep.subr.bf16.mxu0 0
    %484 = vmatpush1.bf16.msra.mxu0 %v203
    %485 = vmatprep.subr.bf16.mxu0 0
    %486 = vmatpush1.bf16.msra.mxu0 %v204
    %487 = vmatprep.subr.bf16.mxu0 0
    %488 = vmatpush1.bf16.msra.mxu0 %v205
    %489 = vmatprep.subr.bf16.mxu0 0
    %490 = vmatpush1.bf16.msra.mxu0 %v206
    %491 = vmatprep.subr.bf16.mxu0 0
    %492 = vmatpush1.bf16.msra.mxu0 %v207
    %493 = vmatprep.subr.bf16.mxu0 0
    %494 = vmatpush1.bf16.msra.mxu0 %v208
    %495 = vmatprep.subr.bf16.mxu0 0
    %496 = vmatpush1.bf16.msra.mxu0 0
    %497 = vmatprep.subr.bf16.mxu0 0
    %498 = vmatpush1.bf16.msra.mxu0 0
    %499 = vmatprep.subr.bf16.mxu0 0
    %500 = vmatpush1.bf16.msra.mxu0 0
    %501 = vmatprep.subr.bf16.mxu0 0
    %502 = vmatpush1.bf16.msra.mxu0 0
    %503 = vmatprep.subr.bf16.mxu0 0
    %504 = vmatpush1.bf16.msra.mxu0 0
    %505 = vmatprep.subr.bf16.mxu0 0
    %506 = vmatpush1.bf16.msra.mxu0 0
    %507 = vmatprep.subr.bf16.mxu0 0
    %508 = vmatpush1.bf16.msra.mxu0 0
    %509 = vmatprep.subr.bf16.mxu0 0
    %510 = vmatpush1.bf16.msra.mxu0 0
    %511 = vmatprep.mubr.bf16.mxu0 0
    %512 = vmatmul.mubr.bf16.gmra.mrb[0].mxu0 %v463
    %v513 = vpop.f32.mrb[0].mxu0
    %v514 = vadd.f32 %v369, %v513
    %v515 = vpop.f32.mrb[0].mxu0
    %v516 = vpop.f32.mrb[0].mxu0
    %v517 = vadd.f32 %v372, %v516
    %v518 = vpop.f32.mrb[0].mxu0
    %519 = vmatprep.mubr.bf16.mxu0 0
    %520 = vmatmul.mubr.bf16.gmra.mrb[0].mxu0 %v464
    %v521 = vpop.f32.mrb[0].mxu0
    %v522 = vadd.f32 %v377, %v521
    %v523 = vpop.f32.mrb[0].mxu0
    %v524 = vpop.f32.mrb[0].mxu0
    %v525 = vadd.f32 %v380, %v524
    %v526 = vpop.f32.mrb[0].mxu0
    %527 = vmatprep.mubr.bf16.mxu0 0
    %528 = vmatmul.mubr.bf16.gmra.mrb[0].mxu0 %v465
    %v529 = vpop.f32.mrb[0].mxu0
    %v530 = vadd.f32 %v385, %v529
    %v531 = vpop.f32.mrb[0].mxu0
    %v532 = vpop.f32.mrb[0].mxu0
    %v533 = vadd.f32 %v388, %v532
    %v534 = vpop.f32.mrb[0].mxu0
    %535 = vmatprep.mubr.bf16.mxu0 0
    %536 = vmatmul.mubr.bf16.gmra.mrb[0].mxu0 %v466
    %v537 = vpop.f32.mrb[0].mxu0
    %v538 = vadd.f32 %v393, %v537
    %v539 = vpop.f32.mrb[0].mxu0
    %v540 = vpop.f32.mrb[0].mxu0
    %v541 = vadd.f32 %v396, %v540
    %v542 = vpop.f32.mrb[0].mxu0
    %543 = vmatprep.mubr.bf16.mxu0 0
    %544 = vmatmul.mubr.bf16.gmra.mrb[0].mxu0 %v467
    %v545 = vpop.f32.mrb[0].mxu0
    %v546 = vadd.f32 %v401, %v545
    %v547 = vpop.f32.mrb[0].mxu0
    %v548 = vpop.f32.mrb[0].mxu0
    %v549 = vadd.f32 %v404, %v548
    %v550 = vpop.f32.mrb[0].mxu0
    %551 = vmatprep.mubr.bf16.mxu0 0
    %552 = vmatmul.mubr.bf16.gmra.mrb[0].mxu0 %v468
    %v553 = vpop.f32.mrb[0].mxu0
    %v554 = vadd.f32 %v409, %v553
    %v555 = vpop.f32.mrb[0].mxu0
    %v556 = vpop.f32.mrb[0].mxu0
    %v557 = vadd.f32 %v412, %v556
    %v558 = vpop.f32.mrb[0].mxu0
    %559 = vmatprep.mubr.bf16.mxu0 0
    %560 = vmatmul.mubr.bf16.gmra.mrb[0].mxu0 %v469
    %v561 = vpop.f32.mrb[0].mxu0
    %v562 = vadd.f32 %v417, %v561
    %v563 = vpop.f32.mrb[0].mxu0
    %v564 = vpop.f32.mrb[0].mxu0
    %v565 = vadd.f32 %v420, %v564
    %v566 = vpop.f32.mrb[0].mxu0
    %567 = vmatprep.mubr.bf16.mxu0 0
    %568 = vmatmul.mubr.bf16.gmra.mrb[0].mxu0 %v470
    %v569 = vpop.f32.mrb[0].mxu0
    %v570 = vadd.f32 %v425, %v569
    %v571 = vpop.f32.mrb[0].mxu0
    %v572 = vpop.f32.mrb[0].mxu0
    %v573 = vadd.f32 %v428, %v572
    %v574 = vpop.f32.mrb[0].mxu0
    %575 = vdwg.mxu0
    %s576 = sld [smem:[#allocation3 + $0x4]]
    %v577 = vstv %s576
    %v578 = vmul.f32 %v577, %v101
    %v579 = vmul.f32 %v577, %v102
    %v580 = vmul.f32 %v577, %v103
    %v581 = vmul.f32 %v577, %v104
    %v582 = vmul.f32 %v577, %v105
    %v583 = vmul.f32 %v577, %v106
    %v584 = vmul.f32 %v577, %v107
    %v585 = vmul.f32 %v577, %v108
    %v586 = vmul.f32 %v577, %v109
    %v587 = vmul.f32 %v577, %v110
    %v588 = vmul.f32 %v577, %v111
    %v589 = vmul.f32 %v577, %v112
    %v590 = vmul.f32 %v577, %v113
    %v591 = vmul.f32 %v577, %v114
    %v592 = vmul.f32 %v577, %v115
    %v593 = vmul.f32 %v577, %v116
    %s594 = sld [smem:[#allocation3 + $0x5]]
    %v595 = vstv %s594
    %v596 = vmul.f32 %v595, %v136
    %v597 = vmul.f32 %v595, %v137
    %v598 = vmul.f32 %v595, %v138
    %v599 = vmul.f32 %v595, %v139
    %v600 = vmul.f32 %v595, %v140
    %v601 = vmul.f32 %v595, %v141
    %v602 = vmul.f32 %v595, %v142
    %v603 = vmul.f32 %v595, %v143
    %v604 = vmul.f32 %v595, %v144
    %v605 = vmul.f32 %v595, %v145
    %v606 = vmul.f32 %v595, %v146
    %v607 = vmul.f32 %v595, %v147
    %v608 = vmul.f32 %v595, %v148
    %v609 = vmul.f32 %v595, %v149
    %v610 = vmul.f32 %v595, %v150
    %v611 = vmul.f32 %v595, %v151
    %v612 = vadd.f32 %v578, %v596
    %v613 = vadd.f32 %v579, %v597
    %v614 = vadd.f32 %v580, %v598
    %v615 = vadd.f32 %v581, %v599
    %v616 = vadd.f32 %v582, %v600
    %v617 = vadd.f32 %v583, %v601
    %v618 = vadd.f32 %v584, %v602
    %v619 = vadd.f32 %v585, %v603
    %v620 = vadd.f32 %v586, %v604
    %v621 = vadd.f32 %v587, %v605
    %v622 = vadd.f32 %v588, %v606
    %v623 = vadd.f32 %v589, %v607
    %v624 = vadd.f32 %v590, %v608
    %v625 = vadd.f32 %v591, %v609
    %v626 = vadd.f32 %v592, %v610
    %v627 = vadd.f32 %v593, %v611
    %s628 = scalar_lea.vmem [#allocation7], 128
    %v629 = vld [vmem:[%s628] sm:$0xf]
    %v630 = vld [vmem:[%s628 + $0x4] sm:$0xf]
    %v631 = vld [vmem:[%s628 + $0x8] sm:$0xf]
    %v632 = vld [vmem:[%s628 + $0xc] sm:$0xf]
    %v633 = vld [vmem:[%s628 + $0x10] sm:$0xf]
    %v634 = vld [vmem:[%s628 + $0x14] sm:$0xf]
    %v635 = vld [vmem:[%s628 + $0x18] sm:$0xf]
    %v636 = vld [vmem:[%s628 + $0x1c] sm:$0xf]
    %v637 = vld [vmem:[%s628 + $0x20] sm:$0xf]
    %v638 = vld [vmem:[%s628 + $0x24] sm:$0xf]
    %v639 = vld [vmem:[%s628 + $0x28] sm:$0xf]
    %v640 = vld [vmem:[%s628 + $0x2c] sm:$0xf]
    %v641 = vld [vmem:[%s628 + $0x30] sm:$0xf]
    %v642 = vld [vmem:[%s628 + $0x34] sm:$0xf]
    %v643 = vld [vmem:[%s628 + $0x38] sm:$0xf]
    %v644 = vld [vmem:[%s628 + $0x3c] sm:$0xf]
    %v645 = vpack.c.bf16 %v613, %v612
    %v646 = vpack.c.bf16 %v615, %v614
    %v647 = vpack.c.bf16 %v617, %v616
    %v648 = vpack.c.bf16 %v619, %v618
    %v649 = vpack.c.bf16 %v621, %v620
    %v650 = vpack.c.bf16 %v623, %v622
    %v651 = vpack.c.bf16 %v625, %v624
    %v652 = vpack.c.bf16 %v627, %v626
    %v669 = vunpack.c.l.b16 %v629
    %v670 = vunpack.c.l.b16 %v630
    %v671 = vunpack.c.l.b16 %v631
    %v672 = vunpack.c.l.b16 %v632
    %v673 = vunpack.c.l.b16 %v633
    %v674 = vunpack.c.l.b16 %v634
    %v675 = vunpack.c.l.b16 %v635
    %v676 = vunpack.c.l.b16 %v636
    %v677 = vunpack.c.l.b16 %v637
    %v678 = vunpack.c.l.b16 %v638
    %v679 = vunpack.c.l.b16 %v639
    %v680 = vunpack.c.l.b16 %v640
    %v681 = vunpack.c.l.b16 %v641
    %v682 = vunpack.c.l.b16 %v642
    %v683 = vunpack.c.l.b16 %v643
    %v684 = vunpack.c.l.b16 %v644
    %v685 = vpack.c.b16 %v670, %v669
    %v686 = vpack.c.b16 %v672, %v671
    %v687 = vpack.c.b16 %v674, %v673
    %v688 = vpack.c.b16 %v676, %v675
    %v689 = vpack.c.b16 %v678, %v677
    %v690 = vpack.c.b16 %v680, %v679
    %v691 = vpack.c.b16 %v682, %v681
    %v692 = vpack.c.b16 %v684, %v683
    %701 = vmatprep.subr.bf16.mxu0 0
    %702 = vmatpush1.bf16.msra.mxu0 %v645
    %703 = vmatprep.subr.bf16.mxu0 0
    %704 = vmatpush1.bf16.msra.mxu0 %v646
    %705 = vmatprep.subr.bf16.mxu0 0
    %706 = vmatpush1.bf16.msra.mxu0 %v647
    %707 = vmatprep.subr.bf16.mxu0 0
    %708 = vmatpush1.bf16.msra.mxu0 %v648
    %709 = vmatprep.subr.bf16.mxu0 0
    %710 = vmatpush1.bf16.msra.mxu0 %v649
    %711 = vmatprep.subr.bf16.mxu0 0
    %712 = vmatpush1.bf16.msra.mxu0 %v650
    %713 = vmatprep.subr.bf16.mxu0 0
    %714 = vmatpush1.bf16.msra.mxu0 %v651
    %715 = vmatprep.subr.bf16.mxu0 0
    %716 = vmatpush1.bf16.msra.mxu0 %v652
    %717 = vmatprep.subr.bf16.mxu0 0
    %718 = vmatpush1.bf16.msra.mxu0 0
    %719 = vmatprep.subr.bf16.mxu0 0
    %720 = vmatpush1.bf16.msra.mxu0 0
    %721 = vmatprep.subr.bf16.mxu0 0
    %722 = vmatpush1.bf16.msra.mxu0 0
    %723 = vmatprep.subr.bf16.mxu0 0
    %724 = vmatpush1.bf16.msra.mxu0 0
    %725 = vmatprep.subr.bf16.mxu0 0
    %726 = vmatpush1.bf16.msra.mxu0 0
    %727 = vmatprep.subr.bf16.mxu0 0
    %728 = vmatpush1.bf16.msra.mxu0 0
    %729 = vmatprep.subr.bf16.mxu0 0
    %730 = vmatpush1.bf16.msra.mxu0 0
    %731 = vmatprep.subr.bf16.mxu0 0
    %732 = vmatpush1.bf16.msra.mxu0 0
    %733 = vmatprep.mubr.bf16.mxu0 0
    %734 = vmatmul.mubr.bf16.gmra.mrb[0].mxu0 %v685
    %v735 = vpop.f32.mrb[0].mxu0
    %v736 = vadd.f32 0.0, %v735
    %v737 = vpop.f32.mrb[0].mxu0
    %v738 = vpop.f32.mrb[0].mxu0
    %v739 = vadd.f32 0.0, %v738
    %v740 = vpop.f32.mrb[0].mxu0
    %741 = vmatprep.mubr.bf16.mxu0 0
    %742 = vmatmul.mubr.bf16.gmra.mrb[0].mxu0 %v686
    %v743 = vpop.f32.mrb[0].mxu0
    %v744 = vadd.f32 0.0, %v743
    %v745 = vpop.f32.mrb[0].mxu0
    %v746 = vpop.f32.mrb[0].mxu0
    %v747 = vadd.f32 0.0, %v746
    %v748 = vpop.f32.mrb[0].mxu0
    %749 = vmatprep.mubr.bf16.mxu0 0
    %750 = vmatmul.mubr.bf16.gmra.mrb[0].mxu0 %v687
    %v751 = vpop.f32.mrb[0].mxu0
    %v752 = vadd.f32 0.0, %v751
    %v753 = vpop.f32.mrb[0].mxu0
    %v754 = vpop.f32.mrb[0].mxu0
    %v755 = vadd.f32 0.0, %v754
    %v756 = vpop.f32.mrb[0].mxu0
    %757 = vmatprep.mubr.bf16.mxu0 0
    %758 = vmatmul.mubr.bf16.gmra.mrb[0].mxu0 %v688
    %v759 = vpop.f32.mrb[0].mxu0
    %v760 = vadd.f32 0.0, %v759
    %v761 = vpop.f32.mrb[0].mxu0
    %v762 = vpop.f32.mrb[0].mxu0
    %v763 = vadd.f32 0.0, %v762
    %v764 = vpop.f32.mrb[0].mxu0
    %765 = vmatprep.mubr.bf16.mxu0 0
    %766 = vmatmul.mubr.bf16.gmra.mrb[0].mxu0 %v689
    %v767 = vpop.f32.mrb[0].mxu0
    %v768 = vadd.f32 0.0, %v767
    %v769 = vpop.f32.mrb[0].mxu0
    %v770 = vpop.f32.mrb[0].mxu0
    %v771 = vadd.f32 0.0, %v770
    %v772 = vpop.f32.mrb[0].mxu0
    %773 = vmatprep.mubr.bf16.mxu0 0
    %774 = vmatmul.mubr.bf16.gmra.mrb[0].mxu0 %v690
    %v775 = vpop.f32.mrb[0].mxu0
    %v776 = vadd.f32 0.0, %v775
    %v777 = vpop.f32.mrb[0].mxu0
    %v778 = vpop.f32.mrb[0].mxu0
    %v779 = vadd.f32 0.0, %v778
    %v780 = vpop.f32.mrb[0].mxu0
    %781 = vmatprep.mubr.bf16.mxu0 0
    %782 = vmatmul.mubr.bf16.gmra.mrb[0].mxu0 %v691
    %v783 = vpop.f32.mrb[0].mxu0
    %v784 = vadd.f32 0.0, %v783
    %v785 = vpop.f32.mrb[0].mxu0
    %v786 = vpop.f32.mrb[0].mxu0
    %v787 = vadd.f32 0.0, %v786
    %v788 = vpop.f32.mrb[0].mxu0
    %789 = vmatprep.mubr.bf16.mxu0 0
    %790 = vmatmul.mubr.bf16.gmra.mrb[0].mxu0 %v692
    %v791 = vpop.f32.mrb[0].mxu0
    %v792 = vadd.f32 0.0, %v791
    %v793 = vpop.f32.mrb[0].mxu0
    %v794 = vpop.f32.mrb[0].mxu0
    %v795 = vadd.f32 0.0, %v794
    %v796 = vpop.f32.mrb[0].mxu0
    %797 = vdwg.mxu0
    %v798 = vadd.f32 %v514, %v736
    %v799 = vadd.f32 %v517, %v739
    %v800 = vadd.f32 %v522, %v744
    %v801 = vadd.f32 %v525, %v747
    %v802 = vadd.f32 %v530, %v752
    %v803 = vadd.f32 %v533, %v755
    %v804 = vadd.f32 %v538, %v760
    %v805 = vadd.f32 %v541, %v763
    %v806 = vadd.f32 %v546, %v768
    %v807 = vadd.f32 %v549, %v771
    %v808 = vadd.f32 %v554, %v776
    %v809 = vadd.f32 %v557, %v779
    %v810 = vadd.f32 %v562, %v784
    %v811 = vadd.f32 %v565, %v787
    %v812 = vadd.f32 %v570, %v792
    %v813 = vadd.f32 %v573, %v795
    %v814 = vld [vmem:[%s3] sm:$0xff]
    %v815 = vld [vmem:[%s3 + $0x8] sm:$0xff]
    %v816 = vld [vmem:[%s3 + $0x10] sm:$0xff]
    %v817 = vld [vmem:[%s3 + $0x18] sm:$0xff]
    %v818 = vld [vmem:[%s3 + $0x20] sm:$0xff]
    %v819 = vld [vmem:[%s3 + $0x28] sm:$0xff]
    %v820 = vld [vmem:[%s3 + $0x30] sm:$0xff]
    %v821 = vld [vmem:[%s3 + $0x38] sm:$0xff]
    %v822 = vld [vmem:[%s3 + $0x40] sm:$0xff]
    %v823 = vld [vmem:[%s3 + $0x48] sm:$0xff]
    %v824 = vld [vmem:[%s3 + $0x50] sm:$0xff]
    %v825 = vld [vmem:[%s3 + $0x58] sm:$0xff]
    %v826 = vld [vmem:[%s3 + $0x60] sm:$0xff]
    %v827 = vld [vmem:[%s3 + $0x68] sm:$0xff]
    %v828 = vld [vmem:[%s3 + $0x70] sm:$0xff]
    %v829 = vld [vmem:[%s3 + $0x78] sm:$0xff]
    %831 = vset.pattern.permute.xlu0 0
    %832 = vperm.xlu0 %831, %v814
    %v833 = vpop.permute.xlu0 %832
    %836 = vset.pattern.permute.xlu0 0
    %837 = vperm.xlu0 %836, %v815
    %v838 = vpop.permute.xlu0 %837
    %841 = vset.pattern.permute.xlu0 0
    %842 = vperm.xlu0 %841, %v816
    %v843 = vpop.permute.xlu0 %842
    %846 = vset.pattern.permute.xlu0 0
    %847 = vperm.xlu0 %846, %v817
    %v848 = vpop.permute.xlu0 %847
    %851 = vset.pattern.permute.xlu0 0
    %852 = vperm.xlu0 %851, %v818
    %v853 = vpop.permute.xlu0 %852
    %856 = vset.pattern.permute.xlu0 0
    %857 = vperm.xlu0 %856, %v819
    %v858 = vpop.permute.xlu0 %857
    %861 = vset.pattern.permute.xlu0 0
    %862 = vperm.xlu0 %861, %v820
    %v863 = vpop.permute.xlu0 %862
    %866 = vset.pattern.permute.xlu0 0
    %867 = vperm.xlu0 %866, %v821
    %v868 = vpop.permute.xlu0 %867
    %871 = vset.pattern.permute.xlu0 0
    %872 = vperm.xlu0 %871, %v822
    %v873 = vpop.permute.xlu0 %872
    %876 = vset.pattern.permute.xlu0 0
    %877 = vperm.xlu0 %876, %v823
    %v878 = vpop.permute.xlu0 %877
    %881 = vset.pattern.permute.xlu0 0
    %882 = vperm.xlu0 %881, %v824
    %v883 = vpop.permute.xlu0 %882
    %886 = vset.pattern.permute.xlu0 0
    %887 = vperm.xlu0 %886, %v825
    %v888 = vpop.permute.xlu0 %887
    %891 = vset.pattern.permute.xlu0 0
    %892 = vperm.xlu0 %891, %v826
    %v893 = vpop.permute.xlu0 %892
    %896 = vset.pattern.permute.xlu0 0
    %897 = vperm.xlu0 %896, %v827
    %v898 = vpop.permute.xlu0 %897
    %901 = vset.pattern.permute.xlu0 0
    %902 = vperm.xlu0 %901, %v828
    %v903 = vpop.permute.xlu0 %902
    %906 = vset.pattern.permute.xlu0 0
    %907 = vperm.xlu0 %906, %v829
    %v908 = vpop.permute.xlu0 %907
    %v910 = vmul.f32 %v798, %v833
    %v911 = vmul.f32 %v799, %v838
    %v912 = vmul.f32 %v800, %v843
    %v913 = vmul.f32 %v801, %v848
    %v914 = vmul.f32 %v802, %v853
    %v915 = vmul.f32 %v803, %v858
    %v916 = vmul.f32 %v804, %v863
    %v917 = vmul.f32 %v805, %v868
    %v918 = vmul.f32 %v806, %v873
    %v919 = vmul.f32 %v807, %v878
    %v920 = vmul.f32 %v808, %v883
    %v921 = vmul.f32 %v809, %v888
    %v922 = vmul.f32 %v810, %v893
    %v923 = vmul.f32 %v811, %v898
    %v924 = vmul.f32 %v812, %v903
    %v925 = vmul.f32 %v813, %v908
    %v926 = vld [vmem:[%s4] sm:$0xff]
    %v927 = vld [vmem:[%s4 + $0x8] sm:$0xff]
    %v928 = vld [vmem:[%s4 + $0x10] sm:$0xff]
    %v929 = vld [vmem:[%s4 + $0x18] sm:$0xff]
    %v930 = vld [vmem:[%s4 + $0x20] sm:$0xff]
    %v931 = vld [vmem:[%s4 + $0x28] sm:$0xff]
    %v932 = vld [vmem:[%s4 + $0x30] sm:$0xff]
    %v933 = vld [vmem:[%s4 + $0x38] sm:$0xff]
    %v934 = vld [vmem:[%s4 + $0x40] sm:$0xff]
    %v935 = vld [vmem:[%s4 + $0x48] sm:$0xff]
    %v936 = vld [vmem:[%s4 + $0x50] sm:$0xff]
    %v937 = vld [vmem:[%s4 + $0x58] sm:$0xff]
    %v938 = vld [vmem:[%s4 + $0x60] sm:$0xff]
    %v939 = vld [vmem:[%s4 + $0x68] sm:$0xff]
    %v940 = vld [vmem:[%s4 + $0x70] sm:$0xff]
    %v941 = vld [vmem:[%s4 + $0x78] sm:$0xff]
    %v942 = vadd.f32 %v910, %v926
    %v943 = vadd.f32 %v911, %v927
    %v944 = vadd.f32 %v912, %v928
    %v945 = vadd.f32 %v913, %v929
    %v946 = vadd.f32 %v914, %v930
    %v947 = vadd.f32 %v915, %v931
    %v948 = vadd.f32 %v916, %v932
    %v949 = vadd.f32 %v917, %v933
    %v950 = vadd.f32 %v918, %v934
    %v951 = vadd.f32 %v919, %v935
    %v952 = vadd.f32 %v920, %v936
    %v953 = vadd.f32 %v921, %v937
    %v954 = vadd.f32 %v922, %v938
    %v955 = vadd.f32 %v923, %v939
    %v956 = vadd.f32 %v924, %v940
    %v957 = vadd.f32 %v925, %v941
    %v958 = vld [vmem:[%s5] sm:$0x1]
    %v960 = vlaneseq
    %v961 = vshrl.u32 %v960, 7
    %v962 = vsub.s32 0, %v961
    %v963 = vrot.slane %v958, %v962
    %v965 = vadd.f32 %v942, %v963
    %v966 = vadd.f32 %v943, %v963
    %v967 = vadd.f32 %v944, %v963
    %v968 = vadd.f32 %v945, %v963
    %v969 = vadd.f32 %v946, %v963
    %v970 = vadd.f32 %v947, %v963
    %v971 = vadd.f32 %v948, %v963
    %v972 = vadd.f32 %v949, %v963
    %v973 = vadd.f32 %v950, %v963
    %v974 = vadd.f32 %v951, %v963
    %v975 = vadd.f32 %v952, %v963
    %v976 = vadd.f32 %v953, %v963
    %v977 = vadd.f32 %v954, %v963
    %v978 = vadd.f32 %v955, %v963
    %v979 = vadd.f32 %v956, %v963
    %v980 = vadd.f32 %v957, %v963
    %v981 = vld [vmem:[%s6] sm:$0xff]
    %v982 = vld [vmem:[%s6 + $0x8] sm:$0xff]
    %v983 = vld [vmem:[%s7] sm:$0xff]
    %v984 = vld [vmem:[%s7 + $0x8] sm:$0xff]
    %985 = vmatprep.subr.mxu0 0.0
    %986 = vmatpush1.msra.mxu0 %v965
    %987 = vmatprep.subr.mxu0 0.0
    %988 = vmatpush1.msra.mxu0 %v966
    %989 = vmatprep.subr.mxu0 0.0
    %990 = vmatpush1.msra.mxu0 %v967
    %991 = vmatprep.subr.mxu0 0.0
    %992 = vmatpush1.msra.mxu0 %v968
    %993 = vmatprep.subr.mxu0 0.0
    %994 = vmatpush1.msra.mxu0 %v969
    %995 = vmatprep.subr.mxu0 0.0
    %996 = vmatpush1.msra.mxu0 %v970
    %997 = vmatprep.subr.mxu0 0.0
    %998 = vmatpush1.msra.mxu0 %v971
    %999 = vmatprep.subr.mxu0 0.0
    %1000 = vmatpush1.msra.mxu0 %v972
    %1001 = vmatprep.subr.mxu0 0.0
    %1002 = vmatpush1.msra.mxu0 %v973
    %1003 = vmatprep.subr.mxu0 0.0
    %1004 = vmatpush1.msra.mxu0 %v974
    %1005 = vmatprep.subr.mxu0 0.0
    %1006 = vmatpush1.msra.mxu0 %v975
    %1007 = vmatprep.subr.mxu0 0.0
    %1008 = vmatpush1.msra.mxu0 %v976
    %1009 = vmatprep.subr.mxu0 0.0
    %1010 = vmatpush1.msra.mxu0 %v977
    %1011 = vmatprep.subr.mxu0 0.0
    %1012 = vmatpush1.msra.mxu0 %v978
    %1013 = vmatprep.subr.mxu0 0.0
    %1014 = vmatpush1.msra.mxu0 %v979
    %1015 = vmatprep.subr.mxu0 0.0
    %1016 = vmatpush1.msra.mxu0 %v980
    %1017 = vmatprep.subr.mxu0 0.0
    %1018 = vmatpush1.msra.mxu0 0.0
    %1019 = vmatprep.subr.mxu0 0.0
    %1020 = vmatpush1.msra.mxu0 0.0
    %1021 = vmatprep.subr.mxu0 0.0
    %1022 = vmatpush1.msra.mxu0 0.0
    %1023 = vmatprep.subr.mxu0 0.0
    %1024 = vmatpush1.msra.mxu0 0.0
    %1025 = vmatprep.subr.mxu0 0.0
    %1026 = vmatpush1.msra.mxu0 0.0
    %1027 = vmatprep.subr.mxu0 0.0
    %1028 = vmatpush1.msra.mxu0 0.0
    %1029 = vmatprep.subr.mxu0 0.0
    %1030 = vmatpush1.msra.mxu0 0.0
    %1031 = vmatprep.subr.mxu0 0.0
    %1032 = vmatpush1.msra.mxu0 0.0
    %1033 = vmatprep.subr.mxu0 0.0
    %1034 = vmatpush1.msra.mxu0 0.0
    %1035 = vmatprep.subr.mxu0 0.0
    %1036 = vmatpush1.msra.mxu0 0.0
    %1037 = vmatprep.subr.mxu0 0.0
    %1038 = vmatpush1.msra.mxu0 0.0
    %1039 = vmatprep.subr.mxu0 0.0
    %1040 = vmatpush1.msra.mxu0 0.0
    %1041 = vmatprep.subr.mxu0 0.0
    %1042 = vmatpush1.msra.mxu0 0.0
    %1043 = vmatprep.subr.mxu0 0.0
    %1044 = vmatpush1.msra.mxu0 0.0
    %1045 = vmatprep.subr.mxu0 0.0
    %1046 = vmatpush1.msra.mxu0 0.0
    %1047 = vmatprep.subr.mxu0 0.0
    %1048 = vmatpush1.msra.mxu0 0.0
    %1049 = vmatprep.mubr.f32.mxu0 0.0
    %1050 = vmatmul.mubr.f32.gmra.mrb[0].mxu0 %v981
    %v1051 = vpop.f32.mrb[0].mxu0
    %v1052 = vadd.f32 %v983, %v1051
    %v1053 = vpop.f32.mrb[0].mxu0
    %1054 = vmatprep.mubr.f32.mxu0 0.0
    %1055 = vmatmul.mubr.f32.gmra.mrb[0].mxu0 %v982
    %v1056 = vpop.f32.mrb[0].mxu0
    %v1057 = vadd.f32 %v984, %v1056
    %v1058 = vpop.f32.mrb[0].mxu0
    %1059 = vdwg.mxu0
    %v1060 = vld [vmem:[#allocation10] sm:$0xff]
    %v1061 = vld [vmem:[#allocation10 + $0x8] sm:$0xff]
    %v1062 = vld [vmem:[#allocation10 + $0x10] sm:$0xff]
    %v1063 = vld [vmem:[#allocation10 + $0x18] sm:$0xff]
    %v1064 = vld [vmem:[#allocation10 + $0x20] sm:$0xff]
    %v1065 = vld [vmem:[#allocation10 + $0x28] sm:$0xff]
    %v1066 = vld [vmem:[#allocation10 + $0x30] sm:$0xff]
    %v1067 = vld [vmem:[#allocation10 + $0x38] sm:$0xff]
    %v1068 = vld [vmem:[#allocation10 + $0x40] sm:$0xff]
    %v1069 = vld [vmem:[#allocation10 + $0x48] sm:$0xff]
    %v1070 = vld [vmem:[#allocation10 + $0x50] sm:$0xff]
    %v1071 = vld [vmem:[#allocation10 + $0x58] sm:$0xff]
    %v1072 = vld [vmem:[#allocation10 + $0x60] sm:$0xff]
    %v1073 = vld [vmem:[#allocation10 + $0x68] sm:$0xff]
    %v1074 = vld [vmem:[#allocation10 + $0x70] sm:$0xff]
    %v1075 = vld [vmem:[#allocation10 + $0x78] sm:$0xff]
    %1076 = vmatprep.subr.mxu0 0.0
    %1077 = vmatpush1.msra.mxu0 %v1060
    %1078 = vmatprep.subr.mxu0 0.0
    %1079 = vmatpush1.msra.mxu0 %v1061
    %1080 = vmatprep.subr.mxu0 0.0
    %1081 = vmatpush1.msra.mxu0 %v1062
    %1082 = vmatprep.subr.mxu0 0.0
    %1083 = vmatpush1.msra.mxu0 %v1063
    %1084 = vmatprep.subr.mxu0 0.0
    %1085 = vmatpush1.msra.mxu0 %v1064
    %1086 = vmatprep.subr.mxu0 0.0
    %1087 = vmatpush1.msra.mxu0 %v1065
    %1088 = vmatprep.subr.mxu0 0.0
    %1089 = vmatpush1.msra.mxu0 %v1066
    %1090 = vmatprep.subr.mxu0 0.0
    %1091 = vmatpush1.msra.mxu0 %v1067
    %1092 = vmatprep.subr.mxu0 0.0
    %1093 = vmatpush1.msra.mxu0 %v1068
    %1094 = vmatprep.subr.mxu0 0.0
    %1095 = vmatpush1.msra.mxu0 %v1069
    %1096 = vmatprep.subr.mxu0 0.0
    %1097 = vmatpush1.msra.mxu0 %v1070
    %1098 = vmatprep.subr.mxu0 0.0
    %1099 = vmatpush1.msra.mxu0 %v1071
    %1100 = vmatprep.subr.mxu0 0.0
    %1101 = vmatpush1.msra.mxu0 %v1072
    %1102 = vmatprep.subr.mxu0 0.0
    %1103 = vmatpush1.msra.mxu0 %v1073
    %1104 = vmatprep.subr.mxu0 0.0
    %1105 = vmatpush1.msra.mxu0 %v1074
    %1106 = vmatprep.subr.mxu0 0.0
    %1107 = vmatpush1.msra.mxu0 %v1075
    %1108 = vmatprep.subr.mxu0 0.0
    %1109 = vmatpush1.msra.mxu0 0.0
    %1110 = vmatprep.subr.mxu0 0.0
    %1111 = vmatpush1.msra.mxu0 0.0
    %1112 = vmatprep.subr.mxu0 0.0
    %1113 = vmatpush1.msra.mxu0 0.0
    %1114 = vmatprep.subr.mxu0 0.0
    %1115 = vmatpush1.msra.mxu0 0.0
    %1116 = vmatprep.subr.mxu0 0.0
    %1117 = vmatpush1.msra.mxu0 0.0
    %1118 = vmatprep.subr.mxu0 0.0
    %1119 = vmatpush1.msra.mxu0 0.0
    %1120 = vmatprep.subr.mxu0 0.0
    %1121 = vmatpush1.msra.mxu0 0.0
    %1122 = vmatprep.subr.mxu0 0.0
    %1123 = vmatpush1.msra.mxu0 0.0
    %1124 = vmatprep.subr.mxu0 0.0
    %1125 = vmatpush1.msra.mxu0 0.0
    %1126 = vmatprep.subr.mxu0 0.0
    %1127 = vmatpush1.msra.mxu0 0.0
    %1128 = vmatprep.subr.mxu0 0.0
    %1129 = vmatpush1.msra.mxu0 0.0
    %1130 = vmatprep.subr.mxu0 0.0
    %1131 = vmatpush1.msra.mxu0 0.0
    %1132 = vmatprep.subr.mxu0 0.0
    %1133 = vmatpush1.msra.mxu0 0.0
    %1134 = vmatprep.subr.mxu0 0.0
    %1135 = vmatpush1.msra.mxu0 0.0
    %1136 = vmatprep.subr.mxu0 0.0
    %1137 = vmatpush1.msra.mxu0 0.0
    %1138 = vmatprep.subr.mxu0 0.0
    %1139 = vmatpush1.msra.mxu0 0.0
    %1140 = vmatprep.mubr.f32.mxu0 0.0
    %1141 = vmatmul.mubr.f32.gmra.mrb[0].mxu0 %v1052
    %v1142 = vpop.f32.mrb[0].mxu0
    %v1143 = vadd.f32 0.0, %v1142
    %v1144 = vpop.f32.mrb[0].mxu0
    %1145 = vmatprep.mubr.f32.mxu0 0.0
    %1146 = vmatmul.mubr.f32.gmra.mrb[0].mxu0 %v1057
    %v1147 = vpop.f32.mrb[0].mxu0
    %v1148 = vadd.f32 0.0, %v1147
    %v1149 = vpop.f32.mrb[0].mxu0
    %1150 = vdwg.mxu0
    %v1151 = vtanh.pop %v1143
    %v1152 = vtanh.pop %v1148
    %v1153 = vld [vmem:[%s9] sm:$0x1]
    %v1155 = vlaneseq
    %v1156 = vshrl.u32 %v1155, 7
    %v1157 = vsub.s32 0, %v1156
    %v1158 = vrot.slane %v1153, %v1157
    %v1160 = vmul.f32 %v1151, %v1158
    %v1161 = vmul.f32 %v1152, %v1158
    %1162 = vadd.xlane.f32.xlu0 %v1160
    %v1163 = vpop.xlane.xlu0 %1162
    %1164 = vadd.xlane.f32.xlu0 %v1161
    %v1165 = vpop.xlane.xlu0 %1164
    %1166 = vadd.xlane.f32.xlu0 %v981
    %v1167 = vpop.xlane.xlu0 %1166
    %1168 = vadd.xlane.f32.xlu0 %v982
    %v1169 = vpop.xlane.xlu0 %1168
    %vm1170 = vcmp.gt.f32.partialorder %v1167, 0.0
    %v1171 = vsel %vm1170, %v1163, -1e+30
    %v1172 = vrot.slane %v1171, 4
    %v1173 = vmax.f32 %v1171, %v1172
    %v1174 = vrot.slane %v1173, 2
    %v1175 = vmax.f32 %v1173, %v1174
    %v1176 = vrot.slane %v1175, 1
    %v1177 = vmax.f32 %v1175, %v1176
    %v1178 = vsub.f32 %v1171, %v1177
    %v1179 = vmul.f32 %v1178, 1.442695
    %v1180 = vpow.pop %v1179
    %v1181 = vmul.f32 %v1180, %v1167
    %v1182 = vrot.slane %v1181, 4
    %v1183 = vadd.f32 %v1181, %v1182
    %v1184 = vrot.slane %v1183, 2
    %v1185 = vadd.f32 %v1183, %v1184
    %v1186 = vrot.slane %v1185, 1
    %v1187 = vadd.f32 %v1185, %v1186
    %v1188 = vmax.f32 %v1187, 1e-30
    %v1189 = vrcp.pop %v1188
    %v1190 = vmul.f32 %v1181, %v1189
    %v1191 = vmul.f32 %v1190, %v1052
    %v1192 = vrot.slane %v1191, 4
    %v1193 = vadd.f32 %v1191, %v1192
    %v1194 = vrot.slane %v1193, 2
    %v1195 = vadd.f32 %v1193, %v1194
    %v1196 = vrot.slane %v1195, 1
    %v1197 = vadd.f32 %v1195, %v1196
    %1198 = vst [vmem:[#allocation2] sm:$0x1] %v1197
    %vm1199 = vcmp.gt.f32.partialorder %v1169, 0.0
    %v1200 = vsel %vm1199, %v1165, -1e+30
    %v1201 = vrot.slane %v1200, 4
    %v1202 = vmax.f32 %v1200, %v1201
    %v1203 = vrot.slane %v1202, 2
    %v1204 = vmax.f32 %v1202, %v1203
    %v1205 = vrot.slane %v1204, 1
    %v1206 = vmax.f32 %v1204, %v1205
    %v1207 = vsub.f32 %v1200, %v1206
    %v1208 = vmul.f32 %v1207, 1.442695
    %v1209 = vpow.pop %v1208
    %v1210 = vmul.f32 %v1209, %v1169
    %v1211 = vrot.slane %v1210, 4
    %v1212 = vadd.f32 %v1210, %v1211
    %v1213 = vrot.slane %v1212, 2
    %v1214 = vadd.f32 %v1212, %v1213
    %v1215 = vrot.slane %v1214, 1
    %v1216 = vadd.f32 %v1214, %v1215
    %v1217 = vmax.f32 %v1216, 1e-30
    %v1218 = vrcp.pop %v1217
    %v1219 = vmul.f32 %v1210, %v1218
    %v1220 = vmul.f32 %v1219, %v1057
    %v1221 = vrot.slane %v1220, 4
    %v1222 = vadd.f32 %v1220, %v1221
    %v1223 = vrot.slane %v1222, 2
    %v1224 = vadd.f32 %v1222, %v1223
    %v1225 = vrot.slane %v1224, 1
    %v1226 = vadd.f32 %v1224, %v1225
    %1227 = vst [vmem:[#allocation2 + $0x1] sm:$0x1] %v1226
    %v1228 = vld [vmem:[#allocation2] sm:$0x3]
    %v1229 = vld [vmem:[%s10] sm:$0x1]
    %v1231 = vlaneseq
    %v1232 = vshrl.u32 %v1231, 7
    %v1233 = vsub.s32 0, %v1232
    %v1234 = vrot.slane %v1229, %v1233
    %1236 = vmatprep.subr.mxu0 0.0
    %1237 = vmatpush1.xpose.msra.mxu0 %v965
    %1238 = vmatprep.subr.mxu0 0.0
    %1239 = vmatpush1.xpose.msra.mxu0 %v966
    %1240 = vmatprep.subr.mxu0 0.0
    %1241 = vmatpush1.xpose.msra.mxu0 %v967
    %1242 = vmatprep.subr.mxu0 0.0
    %1243 = vmatpush1.xpose.msra.mxu0 %v968
    %1244 = vmatprep.subr.mxu0 0.0
    %1245 = vmatpush1.xpose.msra.mxu0 %v969
    %1246 = vmatprep.subr.mxu0 0.0
    %1247 = vmatpush1.xpose.msra.mxu0 %v970
    %1248 = vmatprep.subr.mxu0 0.0
    %1249 = vmatpush1.xpose.msra.mxu0 %v971
    %1250 = vmatprep.subr.mxu0 0.0
    %1251 = vmatpush1.xpose.msra.mxu0 %v972
    %1252 = vmatprep.subr.mxu0 0.0
    %1253 = vmatpush1.xpose.msra.mxu0 %v973
    %1254 = vmatprep.subr.mxu0 0.0
    %1255 = vmatpush1.xpose.msra.mxu0 %v974
    %1256 = vmatprep.subr.mxu0 0.0
    %1257 = vmatpush1.xpose.msra.mxu0 %v975
    %1258 = vmatprep.subr.mxu0 0.0
    %1259 = vmatpush1.xpose.msra.mxu0 %v976
    %1260 = vmatprep.subr.mxu0 0.0
    %1261 = vmatpush1.xpose.msra.mxu0 %v977
    %1262 = vmatprep.subr.mxu0 0.0
    %1263 = vmatpush1.xpose.msra.mxu0 %v978
    %1264 = vmatprep.subr.mxu0 0.0
    %1265 = vmatpush1.xpose.msra.mxu0 %v979
    %1266 = vmatprep.subr.mxu0 0.0
    %1267 = vmatpush1.xpose.msra.mxu0 %v980
    %1268 = vmatprep.subr.mxu0 0.0
    %1269 = vmatpush1.xpose.msra.mxu0 0.0
    %1270 = vmatprep.subr.mxu0 0.0
    %1271 = vmatpush1.xpose.msra.mxu0 0.0
    %1272 = vmatprep.subr.mxu0 0.0
    %1273 = vmatpush1.xpose.msra.mxu0 0.0
    %1274 = vmatprep.subr.mxu0 0.0
    %1275 = vmatpush1.xpose.msra.mxu0 0.0
    %1276 = vmatprep.subr.mxu0 0.0
    %1277 = vmatpush1.xpose.msra.mxu0 0.0
    %1278 = vmatprep.subr.mxu0 0.0
    %1279 = vmatpush1.xpose.msra.mxu0 0.0
    %1280 = vmatprep.subr.mxu0 0.0
    %1281 = vmatpush1.xpose.msra.mxu0 0.0
    %1282 = vmatprep.subr.mxu0 0.0
    %1283 = vmatpush1.xpose.msra.mxu0 0.0
    %1284 = vmatprep.subr.mxu0 0.0
    %1285 = vmatpush1.xpose.msra.mxu0 0.0
    %1286 = vmatprep.subr.mxu0 0.0
    %1287 = vmatpush1.xpose.msra.mxu0 0.0
    %1288 = vmatprep.subr.mxu0 0.0
    %1289 = vmatpush1.xpose.msra.mxu0 0.0
    %1290 = vmatprep.subr.mxu0 0.0
    %1291 = vmatpush1.xpose.msra.mxu0 0.0
    %1292 = vmatprep.subr.mxu0 0.0
    %1293 = vmatpush1.xpose.msra.mxu0 0.0
    %1294 = vmatprep.subr.mxu0 0.0
    %1295 = vmatpush1.xpose.msra.mxu0 0.0
    %1296 = vmatprep.subr.mxu0 0.0
    %1297 = vmatpush1.xpose.msra.mxu0 0.0
    %1298 = vmatprep.subr.mxu0 0.0
    %1299 = vmatpush1.xpose.msra.mxu0 0.0
    %1300 = vmatprep.mubr.f32.mxu0 0.0
    %1301 = vmatmul.mubr.f32.gmra.mrb[0].mxu0 %v1228
    %v1302 = vpop.f32.mrb[0].mxu0
    %v1303 = vadd.f32 %v1234, %v1302
    %v1304 = vpop.f32.mrb[0].mxu0
    %1305 = vdwg.mxu0
    %1306 = vst [vmem:[#allocation11] sm:$0x3] %v1303
    %vm1307 = vcmask 1041408
    %v1308 = vsel %vm1307, %v1303, -inf
    %1309 = vmax.xlane.f32.xlu0 %v1308
    %v1310 = vpop.xlane.xlu0 %1309
    %v1311 = vsub.f32 %v1303, %v1310
    %v1312 = vmul.f32 %v1311, 1.442695
    %v1313 = vpow.pop %v1312
    %v1314 = vsel %vm1307, %v1313, 0.0
    %1315 = vadd.xlane.f32.xlu0 %v1314
    %v1316 = vpop.xlane.xlu0 %1315
    %v1317 = vlog2.pop %v1316
    %v1318 = vmul.f32 %v1317, 0.6931472
    %v1319 = vadd.f32 %v1318, %v1310
    %v1320 = vlaneseq
    %v1321 = vand.u32 %v1320, 127
    %v1322 = vld [vmem:[%s11] sm:$0x3]
    %1323 = vset.pattern.permute.xlu0 0
    %1324 = vperm.xlu0 %1323, %v1322
    %v1325 = vpop.permute.xlu0 %1324
    %vm1326 = vcmp.eq.s32.totalorder %v1321, %v1325
    %v1327 = vsel %vm1326, 1, 0
    %v1328 = vcvt.s32.f32 %v1327
    %v1329 = vsub.f32 %v1319, %v1303
    %v1330 = vmul.f32 %v1328, %v1329
    %v1331 = vsel %vm1307, %v1330, 0.0
    %1332 = vadd.xlane.f32.xlu0 %v1331
    %v1333 = vpop.xlane.xlu0 %1332
    %v1334 = vsel %vm1307, %v1333, 0.0
    %v1335 = vrot.slane %v1334, 4
    %v1336 = vadd.f32 %v1334, %v1335
    %v1337 = vrot.slane %v1336, 2
    %v1338 = vadd.f32 %v1336, %v1337
    %v1339 = vrot.slane %v1338, 1
    %v1340 = vadd.f32 %v1338, %v1339
    %v1341 = vrcp.pop 2.0
    %v1342 = vmul.f32 %v1340, %v1341
    %vm1343 = vcmask 0
    %1344 = vst.msk [vmem:[#allocation12] sm:$0x1] %vm1343, %v1342
    // Predicated region
    $region66: #{_kbrd_device.1} parent=1 // pred_check
      _
    $region67: #{_kbrd_device.1} parent=1 // pred_check_branch
      %1346 = sbr.rel (0) target = $region69
    $region68: #{_kbrd_device.1} parent=1 // pred_region
      %s1348 = ssub.s32 32, 32
      %1349 = vsyncadd [#allocation5], %s1348
      %s1351 = sshll.u32 [#allocation11], 4
      %s1352 = int_to_ptr.vmem [resolvable:$true] %s1351
      %1354 = dma.vmem_to_hbm [thread:$0]  %s1352, 32, %s12, [#allocation5]
    $region69: #{_kbrd_device.1} parent=1 // pred_fallthru
      _
    // Predicated region
    $region70: #{_kbrd_device.1} parent=1 // pred_check
      _
    $region71: #{_kbrd_device.1} parent=1 // pred_check_branch
      %1356 = sbr.rel (0) target = $region73
    $region72: #{_kbrd_device.1} parent=1 // pred_region
      %s1358 = ssub.s32 16, 16
      %1359 = vsyncadd [#allocation13], %s1358
      %s1361 = sshll.u32 [#allocation12], 4
      %s1362 = int_to_ptr.vmem [resolvable:$true] %s1361
      %1364 = dma.vmem_to_hbm [thread:$0]  %s1362, 16, %s13, [#allocation13]
    $region73: #{_kbrd_device.1} parent=1 // pred_fallthru
      _
    // Predicated region
    $region74: #{_kbrd_device.1} parent=1 // pred_check
      _
    $region75: #{_kbrd_device.1} parent=1 // pred_check_branch
      %1366 = sbr.rel (0) target = $region77
    $region76: #{_kbrd_device.1} parent=1 // pred_region
      %1367 = dma.done [#allocation5], 32
    $region77: #{_kbrd_device.1} parent=1 // pred_fallthru
      _
    // Predicated region
    $region78: #{_kbrd_device.1} parent=1 // pred_check
      _
    $region79: #{_kbrd_device.1} parent=1 // pred_check_branch
      %1369 = sbr.rel (0) target = $region81
    $region80: #{_kbrd_device.1} parent=1 // pred_region
      %1370 = dma.done [#allocation13], 16
    $region81: #{_kbrd_device.1} parent=1 // pred_fallthru
      _
    %1371 = vsyncpa [#allocation4], 1
    %1372 = vsyncpa [#allocation9], 1
    %1373 = vsyncpa [#allocation5], 1
    %1374 = vsyncpa [#allocation13], 1
    %1375 = vsyncpa [#allocation6], 1

</llo_original>
